<compile_context>
chip_gen: v7x
topology: tpu7x:2x2x1
jax: 0.10.0
libtpu: 0.0.40
codegen_flags: <defaults>
</compile_context>

<pallas_src>
import jax
import jax.numpy as jnp
from jax import lax
from jax.experimental import pallas as pl
from jax.experimental.pallas import tpu as pltpu

# ---- model / padding constants --------------------------------------------
N = 16                   # number of graph nodes
HIDDEN = 32              # hidden_channels
HEADS = 4
FOUT = HIDDEN // HEADS   # per-head out channels = 8
NUM_CLASSES = 5
F_PAD = 128              # lane padding
HN = HEADS * N           # 64: heads packed along lanes, head h at lanes h*16:(h+1)*16
NEG_INF = -1e30          # plain Python float (no captured jnp constants in the kernel)

# bf16 weight-slab row offsets (all multiples of 16 -> aligned for bf16 sublane tiling)
_W1 = 0        # rows   0:16   layer-1 weight (fin=1) as a single broadcast row (row 0)
_WA1 = 16      # rows  16:48   layer-1 attention expand  [32,128]
_W2 = 48       # rows  48:80   layer-2 weight (real lanes 0:32)
_WA2 = 80      # rows  80:112
_W3 = 112      # rows 112:144
_WA3 = 144     # rows 144:176
_WC1 = 176     # rows 176:208  classifier linear 1 (real lanes 0:16)
_WC2 = 208     # rows 208:336  classifier linear 2 (real rows 0:16, lanes 0:5)
W_ROWS = 336

# f32 data-slab row offsets
_X = 0         # rows  0:16   node features (lane 0 real)
_ADJ = 16      # rows 16:32   additive adjacency bias tiled per head, lanes 0:64
_B = 32        # rows 32:40   bias rows: b1, b2, b3, bc1, bc2
D_ROWS = 40


# ---- fused Pallas kernel ----------------------------------------------------
def gnn_kernel(ds_ref, ws_ref, out_ref):
    f32 = jnp.float32

    # ---------------- data slab ----------------
    x_col = ds_ref[_X:_X + N, 0:1]                    # [16,1]  node feature (Fin = 1)
    adjb = ds_ref[_ADJ:_ADJ + N, 0:HN]                # [16,64] 0 / -1e30, tiled per head
    brows = ds_ref[_B:_B + 8, :]                      # [8,128] bias rows
    b1 = brows[0:1, 0:HIDDEN]
    b2 = brows[1:2, 0:HIDDEN]
    b3 = brows[2:3, 0:HIDDEN]
    bc1 = brows[3:4, :]
    bc2 = brows[4:5, :]

    # -------- head-packing masks: built once from iota, reused by all 3 layers --------
    row_i = lax.broadcasted_iota(jnp.int32, (N, HN), 0)            # node i (sublane)
    col_l = lax.broadcasted_iota(jnp.int32, (N, HN), 1)            # packed lane l = h*16+j
    dsel = jnp.bitwise_and(col_l, N - 1) == row_i                  # [16,64]  (j == i)

    r64 = jnp.right_shift(lax.broadcasted_iota(jnp.int32, (HN, HN), 0), 4)
    c64 = jnp.right_shift(lax.broadcasted_iota(jnp.int32, (HN, HN), 1), 4)
    blk_sum = jnp.where(r64 == c64, 1.0, 0.0).astype(f32)          # [64,64] per-head sum matrix

    r_h = jnp.right_shift(lax.broadcasted_iota(jnp.int32, (HN, HIDDEN), 0), 4)
    c_h = jnp.right_shift(lax.broadcasted_iota(jnp.int32, (HN, HIDDEN), 1), 3)
    agg_mask = r_h == c_h                                          # [64,32] block-diag mask

    def bdot(a, b):   # activations cast once, weights already bf16, f32 accumulate
        return jnp.dot(a.astype(jnp.bfloat16), b, preferred_element_type=f32)

    def leaky(v):
        return jnp.where(v > 0, v, 0.2 * v)                        # LeakyReLU(0.2)

    def gat(hW, watt, brow):
        # hW [16,32] f32;  watt [32,128] bf16: lanes 0:64 dst-expand | 64:128 src-expand
        pa = bdot(hW, watt)                                        # [16,128] one alpha matmul
        pa_dst = pa[:, 0:HN]                                       # [16,64] <hW_i, a_dst_h>
        pa_src = pa[:, HN:2 * HN]                                  # [16,64] <hW_i, a_src_h>
        # source-node term (per lane l = h*16+j): <hW_j, a_src_h>
        src_row = jnp.sum(jnp.where(dsel, pa_src, 0.0), axis=0, keepdims=True)   # [1,64]
        src_max = jnp.max(pa_src, axis=0, keepdims=True)                          # [1,64]

        e = leaky(pa_dst + src_row)                                # packed logits [16,64]
        c = leaky(pa_dst + src_max)                                # per-(i,head) unmasked max
        p = jnp.exp(e + adjb - c)                                  # masked edges -> exp(-1e30)=0
        s = jnp.dot(p, blk_sum, preferred_element_type=f32)        # per-head sums, broadcast
        attn = p / jnp.maximum(s, 1e-30)                           # exact f32 softmax

        # fused aggregation + head concat: block-diagonal source-feature operand
        hrep = jnp.where(agg_mask,
                         jnp.concatenate([hW, hW, hW, hW], axis=0), 0.0)          # [64,32]
        out = jnp.dot(attn, hrep, preferred_element_type=f32)     # [16,32] heads concatenated
        return jnp.maximum(out + brow, 0.0)                        # GAT bias + ReLU (forward)

    # -------- layer 1: Fin = 1 -> x @ W is a VPU broadcast multiply (no MXU pass) -----
    hW1 = x_col * ws_ref[_W1:_W1 + 1, 0:HIDDEN].astype(f32)        # [16,32]
    x1 = gat(hW1, ws_ref[_WA1:_WA1 + HIDDEN, :], b1)

    # -------- layers 2, 3 --------
    x2 = gat(bdot(x1, ws_ref[_W2:_W2 + HIDDEN, 0:HIDDEN]),
             ws_ref[_WA2:_WA2 + HIDDEN, :], b2)
    x3 = gat(bdot(x2, ws_ref[_W3:_W3 + HIDDEN, 0:HIDDEN]),
             ws_ref[_WA3:_WA3 + HIDDEN, :], b3)

    # -------- classifier: Linear -> ReLU -> Dropout(eval=id) -> Linear -> log_softmax --
    hcls = jnp.maximum(bdot(x3, ws_ref[_WC1:_WC1 + HIDDEN, :]) + bc1, 0.0)   # [16,128]
    logits = bdot(hcls, ws_ref[_WC2:_WC2 + F_PAD, :]) + bc2                  # [16,128]
    lane = lax.broadcasted_iota(jnp.int32, logits.shape, 1)
    logits = jnp.where(lane < NUM_CLASSES, logits, NEG_INF)                  # mask pad classes
    m = jnp.max(logits, axis=-1, keepdims=True)
    z = logits - m
    lse = jnp.log(jnp.sum(jnp.exp(z), axis=-1, keepdims=True))
    out_ref[...] = z - lse                                                    # lane-dense store


# ---- host-side packing ------------------------------------------------------
def _att_expand(att):
    """att [HEADS, FOUT] -> [HIDDEN, HN]; column h*N+j holds att[h] at features h*FOUT.."""
    pad = jnp.zeros((HEADS, HIDDEN), jnp.float32)
    for h in range(HEADS):
        pad = pad.at[h, h * FOUT:(h + 1) * FOUT].set(att[h])
    return jnp.repeat(pad, N, axis=0).T                            # [HIDDEN, HN]


def pack_weight_slab(p1, p2, p3, pc):
    ws = jnp.zeros((W_ROWS, F_PAD), jnp.float32)

    def put_gat(ws, off_w, off_a, p, first_layer):
        W, att_src, att_dst, _ = p
        if first_layer:                                            # fin = 1 -> single row
            ws = ws.at[off_w, 0:HIDDEN].set(W[0])
        else:
            ws = ws.at[off_w:off_w + HIDDEN, 0:HIDDEN].set(W)
        watt = jnp.concatenate([_att_expand(att_dst), _att_expand(att_src)], axis=1)
        ws = ws.at[off_a:off_a + HIDDEN, :].set(watt)
        return ws

    ws = put_gat(ws, _W1, _WA1, p1, True)
    ws = put_gat(ws, _W2, _WA2, p2, False)
    ws = put_gat(ws, _W3, _WA3, p3, False)
    WC1, _, WC2, _ = pc
    ws = ws.at[_WC1:_WC1 + HIDDEN, 0:HIDDEN // 2].set(WC1)
    ws = ws.at[_WC2:_WC2 + HIDDEN // 2, 0:NUM_CLASSES].set(WC2)
    return ws.astype(jnp.bfloat16)


def pack_data_slab(x, edge_index, p1, p2, p3, pc):
    src, dst = edge_index[0], edge_index[1]
    adj = jnp.zeros((N, N), jnp.float32).at[dst, src].set(1.0)
    adj = adj.at[jnp.arange(N), jnp.arange(N)].set(1.0)            # PyG add_self_loops
    adj_bias = jnp.where(adj > 0, 0.0, NEG_INF)

    ds = jnp.zeros((D_ROWS, F_PAD), jnp.float32)
    ds = ds.at[_X:_X + N, 0:x.shape[1]].set(x)
    ds = ds.at[_ADJ:_ADJ + N, 0:HN].set(jnp.tile(adj_bias, (1, HEADS)))
    ds = ds.at[_B + 0, 0:HIDDEN].set(p1[3])
    ds = ds.at[_B + 1, 0:HIDDEN].set(p2[3])
    ds = ds.at[_B + 2, 0:HIDDEN].set(p3[3])
    ds = ds.at[_B + 3, 0:HIDDEN // 2].set(pc[1])
    ds = ds.at[_B + 4, 0:NUM_CLASSES].set(pc[3])
    return ds


def standard_gnn_forward(x, edge_index, params):
    p1, p2, p3, pc = params
    ds = pack_data_slab(x, edge_index, p1, p2, p3, pc)             # [40,128]  f32
    ws = pack_weight_slab(p1, p2, p3, pc)                          # [336,128] bf16
    vmem = pl.BlockSpec(memory_space=pltpu.MemorySpace.VMEM)
    out_pad = pl.pallas_call(
        gnn_kernel,
        out_shape=jax.ShapeDtypeStruct((N, F_PAD), jnp.float32),
        in_specs=[vmem, vmem],
        out_specs=vmem,
    )(ds, ws)
    return out_pad[:, :NUM_CLASSES]


# ---- deterministic parameter init (glorot-uniform, GAT bias zeros) ----------
def glorot(key, shape):
    fan_in, fan_out = shape[-2], shape[-1]
    lim = (6.0 / (fan_in + fan_out)) ** 0.5
    return jax.random.uniform(key, shape, jnp.float32, -lim, lim)


def init_gat_params(key, fin):
    k1, k2, k3 = jax.random.split(key, 3)
    W = glorot(k1, (fin, HIDDEN))
    att_src = glorot(k2, (HEADS, FOUT))
    att_dst = glorot(k3, (HEADS, FOUT))
    bias = jnp.zeros((HIDDEN,), jnp.float32)                       # PyG GATConv bias init
    return W, att_src, att_dst, bias


def init_classifier_params(key):
    k1, k2, k3, k4 = jax.random.split(key, 4)
    H2 = HIDDEN // 2
    W1 = glorot(k1, (HIDDEN, H2))
    b1 = jax.random.uniform(k2, (H2,), jnp.float32, -0.1, 0.1)
    W2 = glorot(k3, (H2, NUM_CLASSES))
    b2 = jax.random.uniform(k4, (NUM_CLASSES,), jnp.float32, -0.1, 0.1)
    return W1, b1, W2, b2


if __name__ == "__main__":
    key = jax.random.PRNGKey(0)
    kx, k1, k2, k3, kc = jax.random.split(key, 5)

    # node features: [N, 1]
    x = jax.random.normal(kx, (N, 1), jnp.float32)

    # deterministic edge list: ring (+/-1) and skip (+/-2) connections
    idx = jnp.arange(N)
    src = jnp.concatenate([idx, (idx + 1) % N, idx, (idx + 2) % N])
    dst = jnp.concatenate([(idx + 1) % N, idx, (idx + 2) % N, idx])
    edge_index = jnp.stack([src, dst], axis=0)                     # [2, 64]

    params = (
        init_gat_params(k1, fin=1),
        init_gat_params(k2, fin=HIDDEN),
        init_gat_params(k3, fin=HIDDEN),
        init_classifier_params(kc),
    )

    out = standard_gnn_forward(x, edge_index, params)
    out = jax.block_until_ready(out)

    assert out.shape == (N, NUM_CLASSES)
    assert bool(jnp.all(jnp.isfinite(out)))
    # rows of exp(log_softmax) should sum to ~1
    assert bool(jnp.allclose(jnp.sum(jnp.exp(out), axis=-1), 1.0, atol=1e-4))
    print("KERNEL_OK")
</pallas_src>

<mosaic_0001>
module attributes {stable_mosaic.version = 11 : i64} {
  func.func @gnn_kernel(%arg0: memref<40x128xf32, #tpu.memory_space<vmem>>, %arg1: memref<336x128xbf16, #tpu.memory_space<vmem>>, %arg2: memref<16x128xf32, #tpu.memory_space<vmem>>) attributes {dimension_semantics = [], scalar_prefetch = 0 : i64, scratch_operands = 0 : i64, tpu.core_type = #tpu.core_type<tc>} {
    %c0 = arith.constant 0 : index
    %c0_0 = arith.constant 0 : index
    %0 = vector.load %arg0[%c0, %c0_0] : memref<40x128xf32, #tpu.memory_space<vmem>>, vector<16x1xf32>
    %c16 = arith.constant 16 : index
    %c0_1 = arith.constant 0 : index
    %1 = vector.load %arg0[%c16, %c0_1] : memref<40x128xf32, #tpu.memory_space<vmem>>, vector<16x64xf32>
    %c32 = arith.constant 32 : index
    %c0_2 = arith.constant 0 : index
    %2 = vector.load %arg0[%c32, %c0_2] : memref<40x128xf32, #tpu.memory_space<vmem>>, vector<8x128xf32>
    %3 = vector.extract_strided_slice %2 {offsets = [0, 0], sizes = [1, 32], strides = [1, 1]} : vector<8x128xf32> to vector<1x32xf32>
    %4 = vector.extract_strided_slice %2 {offsets = [1, 0], sizes = [1, 32], strides = [1, 1]} : vector<8x128xf32> to vector<1x32xf32>
    %5 = vector.extract_strided_slice %2 {offsets = [2, 0], sizes = [1, 32], strides = [1, 1]} : vector<8x128xf32> to vector<1x32xf32>
    %6 = vector.extract_strided_slice %2 {offsets = [3, 0], sizes = [1, 128], strides = [1, 1]} : vector<8x128xf32> to vector<1x128xf32>
    %7 = vector.extract_strided_slice %2 {offsets = [4, 0], sizes = [1, 128], strides = [1, 1]} : vector<8x128xf32> to vector<1x128xf32>
    %8 = tpu.iota {dimensions = array<i32: 0>} : vector<16x64xi32>
    %9 = tpu.iota {dimensions = array<i32: 1>} : vector<16x64xi32>
    %c15_i32 = arith.constant 15 : i32
    %10 = vector.broadcast %c15_i32 : i32 to vector<16x64xi32>
    %11 = arith.andi %9, %10 : vector<16x64xi32>
    %12 = arith.cmpi eq, %11, %8 : vector<16x64xi32>
    %13 = tpu.iota {dimensions = array<i32: 0>} : vector<64x64xi32>
    %c4_i32 = arith.constant 4 : i32
    %14 = vector.broadcast %c4_i32 : i32 to vector<64x64xi32>
    %15 = arith.shrsi %13, %14 : vector<64x64xi32>
    %16 = tpu.iota {dimensions = array<i32: 1>} : vector<64x64xi32>
    %c4_i32_3 = arith.constant 4 : i32
    %17 = vector.broadcast %c4_i32_3 : i32 to vector<64x64xi32>
    %18 = arith.shrsi %16, %17 : vector<64x64xi32>
    %19 = arith.cmpi eq, %15, %18 : vector<64x64xi32>
    %cst = arith.constant 1.000000e+00 : f32
    %cst_4 = arith.constant 0.000000e+00 : f32
    %20 = vector.broadcast %cst : f32 to vector<64x64xf32>
    %21 = vector.broadcast %cst_4 : f32 to vector<64x64xf32>
    %22 = arith.select %19, %20, %21 : vector<64x64xi1>, vector<64x64xf32>
    %23 = tpu.iota {dimensions = array<i32: 0>} : vector<64x32xi32>
    %c4_i32_5 = arith.constant 4 : i32
    %24 = vector.broadcast %c4_i32_5 : i32 to vector<64x32xi32>
    %25 = arith.shrsi %23, %24 : vector<64x32xi32>
    %26 = tpu.iota {dimensions = array<i32: 1>} : vector<64x32xi32>
    %c3_i32 = arith.constant 3 : i32
    %27 = vector.broadcast %c3_i32 : i32 to vector<64x32xi32>
    %28 = arith.shrsi %26, %27 : vector<64x32xi32>
    %29 = arith.cmpi eq, %25, %28 : vector<64x32xi32>
    %c0_6 = arith.constant 0 : index
    %c0_7 = arith.constant 0 : index
    %30 = vector.load %arg1[%c0_6, %c0_7] : memref<336x128xbf16, #tpu.memory_space<vmem>>, vector<1x32xbf16>
    %31 = arith.extf %30 : vector<1x32xbf16> to vector<1x32xf32>
    %32 = vector.broadcast %0 : vector<16x1xf32> to vector<16x32xf32>
    %33 = vector.broadcast %31 : vector<1x32xf32> to vector<16x32xf32>
    %34 = arith.mulf %32, %33 : vector<16x32xf32>
    %c16_8 = arith.constant 16 : index
    %c0_9 = arith.constant 0 : index
    %35 = vector.load %arg1[%c16_8, %c0_9] : memref<336x128xbf16, #tpu.memory_space<vmem>>, vector<32x128xbf16>
    %36 = arith.truncf %34 : vector<16x32xf32> to vector<16x32xbf16>
    %cst_10 = arith.constant dense<0.000000e+00> : vector<16x128xf32>
    %37 = tpu.matmul %36, %35, %cst_10 {dimension_numbers = #tpu.dot_dimension_numbers<[1], [0], [0], [1], [0, 0, 1, 1], [], []>} : vector<16x32xbf16>, vector<32x128xbf16>, vector<16x128xf32> -> vector<16x128xf32>
    %38 = vector.extract_strided_slice %37 {offsets = [0, 0], sizes = [16, 64], strides = [1, 1]} : vector<16x128xf32> to vector<16x64xf32>
    %39 = vector.extract_strided_slice %37 {offsets = [0, 64], sizes = [16, 64], strides = [1, 1]} : vector<16x128xf32> to vector<16x64xf32>
    %cst_11 = arith.constant 0.000000e+00 : f32
    %40 = vector.broadcast %cst_11 : f32 to vector<16x64xf32>
    %41 = arith.select %12, %39, %40 : vector<16x64xi1>, vector<16x64xf32>
    %cst_12 = arith.constant dense<0.000000e+00> : vector<64xf32>
    %42 = vector.multi_reduction <add>, %41, %cst_12 [0] : vector<16x64xf32> to vector<64xf32>
    %43 = vector.shape_cast %42 : vector<64xf32> to vector<1x64xf32>
    %cst_13 = arith.constant dense<0xFF800000> : vector<64xf32>
    %44 = vector.multi_reduction <maximumf>, %39, %cst_13 [0] : vector<16x64xf32> to vector<64xf32>
    %45 = vector.shape_cast %44 : vector<64xf32> to vector<1x64xf32>
    %46 = vector.broadcast %43 : vector<1x64xf32> to vector<16x64xf32>
    %47 = arith.addf %38, %46 : vector<16x64xf32>
    %cst_14 = arith.constant 0.000000e+00 : f32
    %48 = vector.broadcast %cst_14 : f32 to vector<16x64xf32>
    %49 = arith.cmpf ogt, %47, %48 : vector<16x64xf32>
    %cst_15 = arith.constant 2.000000e-01 : f32
    %50 = vector.broadcast %cst_15 : f32 to vector<16x64xf32>
    %51 = arith.mulf %50, %47 : vector<16x64xf32>
    %52 = arith.select %49, %47, %51 : vector<16x64xi1>, vector<16x64xf32>
    %53 = vector.broadcast %45 : vector<1x64xf32> to vector<16x64xf32>
    %54 = arith.addf %38, %53 : vector<16x64xf32>
    %cst_16 = arith.constant 0.000000e+00 : f32
    %55 = vector.broadcast %cst_16 : f32 to vector<16x64xf32>
    %56 = arith.cmpf ogt, %54, %55 : vector<16x64xf32>
    %cst_17 = arith.constant 2.000000e-01 : f32
    %57 = vector.broadcast %cst_17 : f32 to vector<16x64xf32>
    %58 = arith.mulf %57, %54 : vector<16x64xf32>
    %59 = arith.select %56, %54, %58 : vector<16x64xi1>, vector<16x64xf32>
    %60 = arith.addf %52, %1 : vector<16x64xf32>
    %61 = arith.subf %60, %59 : vector<16x64xf32>
    %62 = math.exp %61 : vector<16x64xf32>
    %cst_18 = arith.constant dense<0.000000e+00> : vector<16x64xf32>
    %63 = tpu.matmul %62, %22, %cst_18 {dimension_numbers = #tpu.dot_dimension_numbers<[1], [0], [0], [1], [0, 0, 1, 1], [], []>} : vector<16x64xf32>, vector<64x64xf32>, vector<16x64xf32> -> vector<16x64xf32>
    %cst_19 = arith.constant 1.000000e-30 : f32
    %64 = vector.broadcast %cst_19 : f32 to vector<16x64xf32>
    %65 = arith.maximumf %63, %64 : vector<16x64xf32>
    %66 = arith.divf %62, %65 : vector<16x64xf32>
    %67 = tpu.concatenate %34, %34, %34, %34 in 0 : vector<16x32xf32>, vector<16x32xf32>, vector<16x32xf32>, vector<16x32xf32> -> vector<64x32xf32>
    %cst_20 = arith.constant 0.000000e+00 : f32
    %68 = vector.broadcast %cst_20 : f32 to vector<64x32xf32>
    %69 = arith.select %29, %67, %68 : vector<64x32xi1>, vector<64x32xf32>
    %cst_21 = arith.constant dense<0.000000e+00> : vector<16x32xf32>
    %70 = tpu.matmul %66, %69, %cst_21 {dimension_numbers = #tpu.dot_dimension_numbers<[1], [0], [0], [1], [0, 0, 1, 1], [], []>} : vector<16x64xf32>, vector<64x32xf32>, vector<16x32xf32> -> vector<16x32xf32>
    %71 = vector.broadcast %3 : vector<1x32xf32> to vector<16x32xf32>
    %72 = arith.addf %70, %71 : vector<16x32xf32>
    %cst_22 = arith.constant 0.000000e+00 : f32
    %73 = vector.broadcast %cst_22 : f32 to vector<16x32xf32>
    %74 = arith.maximumf %72, %73 : vector<16x32xf32>
    %c48 = arith.constant 48 : index
    %c0_23 = arith.constant 0 : index
    %75 = vector.load %arg1[%c48, %c0_23] : memref<336x128xbf16, #tpu.memory_space<vmem>>, vector<32x32xbf16>
    %76 = arith.truncf %74 : vector<16x32xf32> to vector<16x32xbf16>
    %cst_24 = arith.constant dense<0.000000e+00> : vector<16x32xf32>
    %77 = tpu.matmul %76, %75, %cst_24 {dimension_numbers = #tpu.dot_dimension_numbers<[1], [0], [0], [1], [0, 0, 1, 1], [], []>} : vector<16x32xbf16>, vector<32x32xbf16>, vector<16x32xf32> -> vector<16x32xf32>
    %c80 = arith.constant 80 : index
    %c0_25 = arith.constant 0 : index
    %78 = vector.load %arg1[%c80, %c0_25] : memref<336x128xbf16, #tpu.memory_space<vmem>>, vector<32x128xbf16>
    %79 = arith.truncf %77 : vector<16x32xf32> to vector<16x32xbf16>
    %cst_26 = arith.constant dense<0.000000e+00> : vector<16x128xf32>
    %80 = tpu.matmul %79, %78, %cst_26 {dimension_numbers = #tpu.dot_dimension_numbers<[1], [0], [0], [1], [0, 0, 1, 1], [], []>} : vector<16x32xbf16>, vector<32x128xbf16>, vector<16x128xf32> -> vector<16x128xf32>
    %81 = vector.extract_strided_slice %80 {offsets = [0, 0], sizes = [16, 64], strides = [1, 1]} : vector<16x128xf32> to vector<16x64xf32>
    %82 = vector.extract_strided_slice %80 {offsets = [0, 64], sizes = [16, 64], strides = [1, 1]} : vector<16x128xf32> to vector<16x64xf32>
    %cst_27 = arith.constant 0.000000e+00 : f32
    %83 = vector.broadcast %cst_27 : f32 to vector<16x64xf32>
    %84 = arith.select %12, %82, %83 : vector<16x64xi1>, vector<16x64xf32>
    %cst_28 = arith.constant dense<0.000000e+00> : vector<64xf32>
    %85 = vector.multi_reduction <add>, %84, %cst_28 [0] : vector<16x64xf32> to vector<64xf32>
    %86 = vector.shape_cast %85 : vector<64xf32> to vector<1x64xf32>
    %cst_29 = arith.constant dense<0xFF800000> : vector<64xf32>
    %87 = vector.multi_reduction <maximumf>, %82, %cst_29 [0] : vector<16x64xf32> to vector<64xf32>
    %88 = vector.shape_cast %87 : vector<64xf32> to vector<1x64xf32>
    %89 = vector.broadcast %86 : vector<1x64xf32> to vector<16x64xf32>
    %90 = arith.addf %81, %89 : vector<16x64xf32>
    %cst_30 = arith.constant 0.000000e+00 : f32
    %91 = vector.broadcast %cst_30 : f32 to vector<16x64xf32>
    %92 = arith.cmpf ogt, %90, %91 : vector<16x64xf32>
    %cst_31 = arith.constant 2.000000e-01 : f32
    %93 = vector.broadcast %cst_31 : f32 to vector<16x64xf32>
    %94 = arith.mulf %93, %90 : vector<16x64xf32>
    %95 = arith.select %92, %90, %94 : vector<16x64xi1>, vector<16x64xf32>
    %96 = vector.broadcast %88 : vector<1x64xf32> to vector<16x64xf32>
    %97 = arith.addf %81, %96 : vector<16x64xf32>
    %cst_32 = arith.constant 0.000000e+00 : f32
    %98 = vector.broadcast %cst_32 : f32 to vector<16x64xf32>
    %99 = arith.cmpf ogt, %97, %98 : vector<16x64xf32>
    %cst_33 = arith.constant 2.000000e-01 : f32
    %100 = vector.broadcast %cst_33 : f32 to vector<16x64xf32>
    %101 = arith.mulf %100, %97 : vector<16x64xf32>
    %102 = arith.select %99, %97, %101 : vector<16x64xi1>, vector<16x64xf32>
    %103 = arith.addf %95, %1 : vector<16x64xf32>
    %104 = arith.subf %103, %102 : vector<16x64xf32>
    %105 = math.exp %104 : vector<16x64xf32>
    %cst_34 = arith.constant dense<0.000000e+00> : vector<16x64xf32>
    %106 = tpu.matmul %105, %22, %cst_34 {dimension_numbers = #tpu.dot_dimension_numbers<[1], [0], [0], [1], [0, 0, 1, 1], [], []>} : vector<16x64xf32>, vector<64x64xf32>, vector<16x64xf32> -> vector<16x64xf32>
    %cst_35 = arith.constant 1.000000e-30 : f32
    %107 = vector.broadcast %cst_35 : f32 to vector<16x64xf32>
    %108 = arith.maximumf %106, %107 : vector<16x64xf32>
    %109 = arith.divf %105, %108 : vector<16x64xf32>
    %110 = tpu.concatenate %77, %77, %77, %77 in 0 : vector<16x32xf32>, vector<16x32xf32>, vector<16x32xf32>, vector<16x32xf32> -> vector<64x32xf32>
    %cst_36 = arith.constant 0.000000e+00 : f32
    %111 = vector.broadcast %cst_36 : f32 to vector<64x32xf32>
    %112 = arith.select %29, %110, %111 : vector<64x32xi1>, vector<64x32xf32>
    %cst_37 = arith.constant dense<0.000000e+00> : vector<16x32xf32>
    %113 = tpu.matmul %109, %112, %cst_37 {dimension_numbers = #tpu.dot_dimension_numbers<[1], [0], [0], [1], [0, 0, 1, 1], [], []>} : vector<16x64xf32>, vector<64x32xf32>, vector<16x32xf32> -> vector<16x32xf32>
    %114 = vector.broadcast %4 : vector<1x32xf32> to vector<16x32xf32>
    %115 = arith.addf %113, %114 : vector<16x32xf32>
    %cst_38 = arith.constant 0.000000e+00 : f32
    %116 = vector.broadcast %cst_38 : f32 to vector<16x32xf32>
    %117 = arith.maximumf %115, %116 : vector<16x32xf32>
    %c112 = arith.constant 112 : index
    %c0_39 = arith.constant 0 : index
    %118 = vector.load %arg1[%c112, %c0_39] : memref<336x128xbf16, #tpu.memory_space<vmem>>, vector<32x32xbf16>
    %119 = arith.truncf %117 : vector<16x32xf32> to vector<16x32xbf16>
    %cst_40 = arith.constant dense<0.000000e+00> : vector<16x32xf32>
    %120 = tpu.matmul %119, %118, %cst_40 {dimension_numbers = #tpu.dot_dimension_numbers<[1], [0], [0], [1], [0, 0, 1, 1], [], []>} : vector<16x32xbf16>, vector<32x32xbf16>, vector<16x32xf32> -> vector<16x32xf32>
    %c144 = arith.constant 144 : index
    %c0_41 = arith.constant 0 : index
    %121 = vector.load %arg1[%c144, %c0_41] : memref<336x128xbf16, #tpu.memory_space<vmem>>, vector<32x128xbf16>
    %122 = arith.truncf %120 : vector<16x32xf32> to vector<16x32xbf16>
    %cst_42 = arith.constant dense<0.000000e+00> : vector<16x128xf32>
    %123 = tpu.matmul %122, %121, %cst_42 {dimension_numbers = #tpu.dot_dimension_numbers<[1], [0], [0], [1], [0, 0, 1, 1], [], []>} : vector<16x32xbf16>, vector<32x128xbf16>, vector<16x128xf32> -> vector<16x128xf32>
    %124 = vector.extract_strided_slice %123 {offsets = [0, 0], sizes = [16, 64], strides = [1, 1]} : vector<16x128xf32> to vector<16x64xf32>
    %125 = vector.extract_strided_slice %123 {offsets = [0, 64], sizes = [16, 64], strides = [1, 1]} : vector<16x128xf32> to vector<16x64xf32>
    %cst_43 = arith.constant 0.000000e+00 : f32
    %126 = vector.broadcast %cst_43 : f32 to vector<16x64xf32>
    %127 = arith.select %12, %125, %126 : vector<16x64xi1>, vector<16x64xf32>
    %cst_44 = arith.constant dense<0.000000e+00> : vector<64xf32>
    %128 = vector.multi_reduction <add>, %127, %cst_44 [0] : vector<16x64xf32> to vector<64xf32>
    %129 = vector.shape_cast %128 : vector<64xf32> to vector<1x64xf32>
    %cst_45 = arith.constant dense<0xFF800000> : vector<64xf32>
    %130 = vector.multi_reduction <maximumf>, %125, %cst_45 [0] : vector<16x64xf32> to vector<64xf32>
    %131 = vector.shape_cast %130 : vector<64xf32> to vector<1x64xf32>
    %132 = vector.broadcast %129 : vector<1x64xf32> to vector<16x64xf32>
    %133 = arith.addf %124, %132 : vector<16x64xf32>
    %cst_46 = arith.constant 0.000000e+00 : f32
    %134 = vector.broadcast %cst_46 : f32 to vector<16x64xf32>
    %135 = arith.cmpf ogt, %133, %134 : vector<16x64xf32>
    %cst_47 = arith.constant 2.000000e-01 : f32
    %136 = vector.broadcast %cst_47 : f32 to vector<16x64xf32>
    %137 = arith.mulf %136, %133 : vector<16x64xf32>
    %138 = arith.select %135, %133, %137 : vector<16x64xi1>, vector<16x64xf32>
    %139 = vector.broadcast %131 : vector<1x64xf32> to vector<16x64xf32>
    %140 = arith.addf %124, %139 : vector<16x64xf32>
    %cst_48 = arith.constant 0.000000e+00 : f32
    %141 = vector.broadcast %cst_48 : f32 to vector<16x64xf32>
    %142 = arith.cmpf ogt, %140, %141 : vector<16x64xf32>
    %cst_49 = arith.constant 2.000000e-01 : f32
    %143 = vector.broadcast %cst_49 : f32 to vector<16x64xf32>
    %144 = arith.mulf %143, %140 : vector<16x64xf32>
    %145 = arith.select %142, %140, %144 : vector<16x64xi1>, vector<16x64xf32>
    %146 = arith.addf %138, %1 : vector<16x64xf32>
    %147 = arith.subf %146, %145 : vector<16x64xf32>
    %148 = math.exp %147 : vector<16x64xf32>
    %cst_50 = arith.constant dense<0.000000e+00> : vector<16x64xf32>
    %149 = tpu.matmul %148, %22, %cst_50 {dimension_numbers = #tpu.dot_dimension_numbers<[1], [0], [0], [1], [0, 0, 1, 1], [], []>} : vector<16x64xf32>, vector<64x64xf32>, vector<16x64xf32> -> vector<16x64xf32>
    %cst_51 = arith.constant 1.000000e-30 : f32
    %150 = vector.broadcast %cst_51 : f32 to vector<16x64xf32>
    %151 = arith.maximumf %149, %150 : vector<16x64xf32>
    %152 = arith.divf %148, %151 : vector<16x64xf32>
    %153 = tpu.concatenate %120, %120, %120, %120 in 0 : vector<16x32xf32>, vector<16x32xf32>, vector<16x32xf32>, vector<16x32xf32> -> vector<64x32xf32>
    %cst_52 = arith.constant 0.000000e+00 : f32
    %154 = vector.broadcast %cst_52 : f32 to vector<64x32xf32>
    %155 = arith.select %29, %153, %154 : vector<64x32xi1>, vector<64x32xf32>
    %cst_53 = arith.constant dense<0.000000e+00> : vector<16x32xf32>
    %156 = tpu.matmul %152, %155, %cst_53 {dimension_numbers = #tpu.dot_dimension_numbers<[1], [0], [0], [1], [0, 0, 1, 1], [], []>} : vector<16x64xf32>, vector<64x32xf32>, vector<16x32xf32> -> vector<16x32xf32>
    %157 = vector.broadcast %5 : vector<1x32xf32> to vector<16x32xf32>
    %158 = arith.addf %156, %157 : vector<16x32xf32>
    %cst_54 = arith.constant 0.000000e+00 : f32
    %159 = vector.broadcast %cst_54 : f32 to vector<16x32xf32>
    %160 = arith.maximumf %158, %159 : vector<16x32xf32>
    %c176 = arith.constant 176 : index
    %c0_55 = arith.constant 0 : index
    %161 = vector.load %arg1[%c176, %c0_55] : memref<336x128xbf16, #tpu.memory_space<vmem>>, vector<32x128xbf16>
    %162 = arith.truncf %160 : vector<16x32xf32> to vector<16x32xbf16>
    %cst_56 = arith.constant dense<0.000000e+00> : vector<16x128xf32>
    %163 = tpu.matmul %162, %161, %cst_56 {dimension_numbers = #tpu.dot_dimension_numbers<[1], [0], [0], [1], [0, 0, 1, 1], [], []>} : vector<16x32xbf16>, vector<32x128xbf16>, vector<16x128xf32> -> vector<16x128xf32>
    %164 = vector.broadcast %6 : vector<1x128xf32> to vector<16x128xf32>
    %165 = arith.addf %163, %164 : vector<16x128xf32>
    %cst_57 = arith.constant 0.000000e+00 : f32
    %166 = vector.broadcast %cst_57 : f32 to vector<16x128xf32>
    %167 = arith.maximumf %165, %166 : vector<16x128xf32>
    %c208 = arith.constant 208 : index
    %c0_58 = arith.constant 0 : index
    %168 = vector.load %arg1[%c208, %c0_58] : memref<336x128xbf16, #tpu.memory_space<vmem>>, vector<128x128xbf16>
    %169 = arith.truncf %167 : vector<16x128xf32> to vector<16x128xbf16>
    %cst_59 = arith.constant dense<0.000000e+00> : vector<16x128xf32>
    %170 = tpu.matmul %169, %168, %cst_59 {dimension_numbers = #tpu.dot_dimension_numbers<[1], [0], [0], [1], [0, 0, 1, 1], [], []>} : vector<16x128xbf16>, vector<128x128xbf16>, vector<16x128xf32> -> vector<16x128xf32>
    %171 = vector.broadcast %7 : vector<1x128xf32> to vector<16x128xf32>
    %172 = arith.addf %170, %171 : vector<16x128xf32>
    %173 = tpu.iota {dimensions = array<i32: 1>} : vector<16x128xi32>
    %c5_i32 = arith.constant 5 : i32
    %174 = vector.broadcast %c5_i32 : i32 to vector<16x128xi32>
    %175 = arith.cmpi slt, %173, %174 : vector<16x128xi32>
    %cst_60 = arith.constant -1.000000e+30 : f32
    %176 = vector.broadcast %cst_60 : f32 to vector<16x128xf32>
    %177 = arith.select %175, %172, %176 : vector<16x128xi1>, vector<16x128xf32>
    %cst_61 = arith.constant dense<0xFF800000> : vector<16xf32>
    %178 = vector.multi_reduction <maximumf>, %177, %cst_61 [1] : vector<16x128xf32> to vector<16xf32>
    %179 = vector.shape_cast %178 : vector<16xf32> to vector<16x1xf32>
    %180 = vector.broadcast %179 : vector<16x1xf32> to vector<16x128xf32>
    %181 = arith.subf %177, %180 : vector<16x128xf32>
    %182 = math.exp %181 : vector<16x128xf32>
    %cst_62 = arith.constant dense<0.000000e+00> : vector<16xf32>
    %183 = vector.multi_reduction <add>, %182, %cst_62 [1] : vector<16x128xf32> to vector<16xf32>
    %184 = vector.shape_cast %183 : vector<16xf32> to vector<16x1xf32>
    %185 = math.log %184 : vector<16x1xf32>
    %186 = vector.broadcast %185 : vector<16x1xf32> to vector<16x128xf32>
    %187 = arith.subf %181, %186 : vector<16x128xf32>
    %c0_63 = arith.constant 0 : index
    %c0_64 = arith.constant 0 : index
    %188 = vector.load %arg2[%c0_63, %c0_64] : memref<16x128xf32, #tpu.memory_space<vmem>>, vector<16x128xf32>
    tpu.vector_store %arg2[%c0_63, %c0_64], %187 {strides = array<i32>} : memref<16x128xf32, #tpu.memory_space<vmem>>, vector<16x128xf32>,
    return
  }
}

</mosaic_0001>

<llo_original>
// kernel: tpu_custom_call.1
$region0: #{tpu_custom_call.1}
  #allocation0 [shape = 'u32[]', space=smem, size = 0x4, offset = 0x4, fixed_abs, tag = 'smem constant byte address 0x4 - core index']
  #allocation1 [shape = 'u32[144,128]{1,0:T(1,128)}', space=vmem, size = 0x12000, scoped, tag = 'internal scratch']
  %s0 = inlined_call_operand.hbm [shape: f32[40,128], index: 0, kind: input, shape index: {}]
  %s1 = inlined_call_operand.hbm [shape: bf16[336,128], index: 1, kind: input, shape index: {}]
  %s2 = inlined_call_operand.hbm [shape: f32[16,128], index: 2, kind: output, shape index: {}]
  %s3 = sld [smem:[#allocation0]]
  $region26: #{tpu_custom_call.1} parent=0
    _
  %s5 = ssub.s32 1, %s3
  %s6 = scalar_select 0, %s5, %s3
  $region1: #{tpu_custom_call.1} parent=0
    #allocation2 [shape = 'u8[20480]{0}', space=vmem, size = 0x5000, scoped, tag = 'input window, operand 0, single buffered']
    #allocation3 [shape = 's32[1]{0}', space=sflag, size = 0x4, scoped, tag = 'scoped memory for tpu_custom_call.1']
    #allocation4 [shape = 's32[1]{0}', space=sflag, size = 0x4, scoped, tag = 'scoped memory for tpu_custom_call.1']
    #allocation5 [shape = 'u8[86016]{0}', space=vmem, size = 0x15000, scoped, tag = 'input window, operand 1, single buffered']
    #allocation6 [shape = 's32[1]{0}', space=sflag, size = 0x4, scoped, tag = 'scoped memory for tpu_custom_call.1']
    #allocation7 [shape = 'u8[8192]{0}', space=vmem, size = 0x2000, scoped, tag = 'output window, operand 0, single buffered']
    %7 = vsyncpa [#allocation3], 0
    %8 = vsyncpa [#allocation6], 0
    %9 = vsyncpa [#allocation4], 0
    // Predicated region
    $region2: #{tpu_custom_call.1} parent=1 // pred_check
      _
    $region3: #{tpu_custom_call.1} parent=1 // pred_check_branch
      %11 = sbr.rel (0) target = $region5
    $region4: #{tpu_custom_call.1} parent=1 // pred_region
      %s13 = ssub.s32 640, 640
      %14 = vsyncadd [#allocation3], %s13
      %s15 = sshll.u32 [#allocation2], 4
      %s16 = int_to_ptr.vmem [resolvable:$true] %s15
      %21 = dma.hbm_to_vmem [thread:$0]  %s0, 640, %s16, [#allocation3], 128, 128, 8
    $region5: #{tpu_custom_call.1} parent=1 // pred_fallthru
      _
    // Predicated region
    $region6: #{tpu_custom_call.1} parent=1 // pred_check
      _
    $region7: #{tpu_custom_call.1} parent=1 // pred_check_branch
      %23 = sbr.rel (0) target = $region9
    $region8: #{tpu_custom_call.1} parent=1 // pred_region
      %s25 = ssub.s32 2688, 2688
      %26 = vsyncadd [#allocation6], %s25
      %s27 = sshll.u32 [#allocation5], 4
      %s28 = int_to_ptr.vmem [resolvable:$true] %s27
      %33 = dma.hbm_to_vmem [thread:$0]  %s1, 2688, %s28, [#allocation6], 64, 64, 4
    $region9: #{tpu_custom_call.1} parent=1 // pred_fallthru
      _
    // Predicated region
    $region10: #{tpu_custom_call.1} parent=1 // pred_check
      _
    $region11: #{tpu_custom_call.1} parent=1 // pred_check_branch
      %35 = sbr.rel (0) target = $region13
    $region12: #{tpu_custom_call.1} parent=1 // pred_region
      %36 = dma.done [#allocation3], 640
    $region13: #{tpu_custom_call.1} parent=1 // pred_fallthru
      _
    // Predicated region
    $region14: #{tpu_custom_call.1} parent=1 // pred_check
      _
    $region15: #{tpu_custom_call.1} parent=1 // pred_check_branch
      %38 = sbr.rel (0) target = $region17
    $region16: #{tpu_custom_call.1} parent=1 // pred_region
      %39 = dma.done [#allocation6], 2688
    $region17: #{tpu_custom_call.1} parent=1 // pred_fallthru
      _
    %v41 = vld [vmem:[#allocation2] sm:$0xff]
    %v42 = vld [vmem:[#allocation2 + $0x8] sm:$0xff]
    %v43 = vld [vmem:[#allocation2 + $0x10] sm:$0xff]
    %v44 = vld [vmem:[#allocation2 + $0x18] sm:$0xff]
    %v45 = vld [vmem:[#allocation2 + $0x20] sm:$0xff]
    %v46 = vlaneseq
    %v47 = vshrl.u32 %v46, 7
    %v48 = vadd.s32 %v47, 8
    %v49 = vlaneseq
    %v50 = vand.u32 %v49, 127
    %v51 = vand.u32 %v50, 15
    %vm52 = vcmp.eq.s32.totalorder %v51, %v47
    %vm53 = vcmp.eq.s32.totalorder %v51, %v48
    %v54 = vadd.s32 %v47, 16
    %v55 = vadd.s32 %v47, 24
    %v56 = vadd.s32 %v47, 32
    %v57 = vadd.s32 %v47, 40
    %v58 = vadd.s32 %v47, 48
    %v59 = vadd.s32 %v47, 56
    %v60 = vshra.s32 %v47, 4
    %v61 = vshra.s32 %v48, 4
    %v62 = vshra.s32 %v54, 4
    %v63 = vshra.s32 %v55, 4
    %v64 = vshra.s32 %v56, 4
    %v65 = vshra.s32 %v57, 4
    %v66 = vshra.s32 %v58, 4
    %v67 = vshra.s32 %v59, 4
    %v68 = vshra.s32 %v50, 4
    %vm69 = vcmp.eq.s32.totalorder %v60, %v68
    %vm70 = vcmp.eq.s32.totalorder %v61, %v68
    %vm71 = vcmp.eq.s32.totalorder %v62, %v68
    %vm72 = vcmp.eq.s32.totalorder %v63, %v68
    %vm73 = vcmp.eq.s32.totalorder %v64, %v68
    %vm74 = vcmp.eq.s32.totalorder %v65, %v68
    %vm75 = vcmp.eq.s32.totalorder %v66, %v68
    %vm76 = vcmp.eq.s32.totalorder %v67, %v68
    %v77 = vsel %vm69, 1.0, 0.0
    %v78 = vsel %vm70, 1.0, 0.0
    %v79 = vsel %vm71, 1.0, 0.0
    %v80 = vsel %vm72, 1.0, 0.0
    %v81 = vsel %vm73, 1.0, 0.0
    %v82 = vsel %vm74, 1.0, 0.0
    %v83 = vsel %vm75, 1.0, 0.0
    %v84 = vsel %vm76, 1.0, 0.0
    %v85 = vshra.s32 %v50, 3
    %vm86 = vcmp.eq.s32.totalorder %v60, %v85
    %vm87 = vcmp.eq.s32.totalorder %v61, %v85
    %vm88 = vcmp.eq.s32.totalorder %v62, %v85
    %vm89 = vcmp.eq.s32.totalorder %v63, %v85
    %vm90 = vcmp.eq.s32.totalorder %v64, %v85
    %vm91 = vcmp.eq.s32.totalorder %v65, %v85
    %vm92 = vcmp.eq.s32.totalorder %v66, %v85
    %vm93 = vcmp.eq.s32.totalorder %v67, %v85
    %v94 = vld [vmem:[#allocation5] sm:$0x1]
    %v95 = vunpack.c.l.bf16 %v94
    %97 = vset.pattern.permute.xlu0 0
    %98 = vperm.xlu0 %97, %v41
    %v99 = vpop.permute.xlu0 %98
    %102 = vset.pattern.permute.xlu0 0
    %103 = vperm.xlu0 %102, %v42
    %v104 = vpop.permute.xlu0 %103
    %v106 = vlaneseq
    %v107 = vshrl.u32 %v106, 7
    %v108 = vsub.s32 0, %v107
    %v109 = vrot.slane %v95, %v108
    %v110 = vmul.f32 %v99, %v109
    %v111 = vmul.f32 %v104, %v109
    %v112 = vld [vmem:[#allocation5 + $0x8] sm:$0xf]
    %v113 = vld [vmem:[#allocation5 + $0xc] sm:$0xf]
    %v114 = vld [vmem:[#allocation5 + $0x10] sm:$0xf]
    %v115 = vld [vmem:[#allocation5 + $0x14] sm:$0xf]
    %v116 = vpack.c.bf16 %v111, %v110
    %v121 = vunpack.c.l.b16 %v112
    %v122 = vunpack.c.l.b16 %v113
    %v123 = vunpack.c.l.b16 %v114
    %v124 = vunpack.c.l.b16 %v115
    %v125 = vpack.c.b16 %v122, %v121
    %v126 = vpack.c.b16 %v124, %v123
    %vm129 = vcmask 261120
    %v131 = vsel %vm129, %v116, 0
    %133 = vmatprep.subr.bf16.mxu0 0
    %134 = vmatpush1.bf16.msra.mxu0 %v125
    %135 = vmatprep.subr.bf16.mxu0 0
    %136 = vmatpush1.bf16.msra.mxu0 %v126
    %137 = vmatprep.subr.bf16.mxu0 0
    %138 = vmatpush1.bf16.msra.mxu0 0
    %139 = vmatprep.subr.bf16.mxu0 0
    %140 = vmatpush1.bf16.msra.mxu0 0
    %141 = vmatprep.subr.bf16.mxu0 0
    %142 = vmatpush1.bf16.msra.mxu0 0
    %143 = vmatprep.subr.bf16.mxu0 0
    %144 = vmatpush1.bf16.msra.mxu0 0
    %145 = vmatprep.subr.bf16.mxu0 0
    %146 = vmatpush1.bf16.msra.mxu0 0
    %147 = vmatprep.subr.bf16.mxu0 0
    %148 = vmatpush1.bf16.msra.mxu0 0
    %149 = vmatprep.subr.bf16.mxu0 0
    %150 = vmatpush1.bf16.msra.mxu0 0
    %151 = vmatprep.subr.bf16.mxu0 0
    %152 = vmatpush1.bf16.msra.mxu0 0
    %153 = vmatprep.subr.bf16.mxu0 0
    %154 = vmatpush1.bf16.msra.mxu0 0
    %155 = vmatprep.subr.bf16.mxu0 0
    %156 = vmatpush1.bf16.msra.mxu0 0
    %157 = vmatprep.subr.bf16.mxu0 0
    %158 = vmatpush1.bf16.msra.mxu0 0
    %159 = vmatprep.subr.bf16.mxu0 0
    %160 = vmatpush1.bf16.msra.mxu0 0
    %161 = vmatprep.subr.bf16.mxu0 0
    %162 = vmatpush1.bf16.msra.mxu0 0
    %163 = vmatprep.subr.bf16.mxu0 0
    %164 = vmatpush1.bf16.msra.mxu0 0
    %165 = vmatprep.mubr.bf16.mxu0 0
    %166 = vmatmul.mubr.bf16.gmra.mrb[0].mxu0 %v131
    %v167 = vpop.f32.mrb[0].mxu0
    %v168 = vadd.f32 0.0, %v167
    %v169 = vpop.f32.mrb[0].mxu0
    %v170 = vpop.f32.mrb[0].mxu0
    %v171 = vadd.f32 0.0, %v170
    %v172 = vpop.f32.mrb[0].mxu0
    %173 = vdwg.mxu0
    %176 = vrot.lane.b32.xlu0 %v168, 64
    %v177 = vpop.permute.xlu0 %176
    %178 = vrot.lane.b32.xlu0 %v171, 64
    %v179 = vpop.permute.xlu0 %178
    %v182 = vsel %vm52, %v177, 0.0
    %v183 = vsel %vm53, %v179, 0.0
    %vm184 = vcmask 523264
    %v185 = vsel %vm184, %v182, 0.0
    %v186 = vsel %vm184, %v183, 0.0
    %v187 = vadd.f32 %v185, %v186
    %v188 = vrot.slane %v187, 4
    %v189 = vadd.f32 %v187, %v188
    %v190 = vrot.slane %v189, 2
    %v191 = vadd.f32 %v189, %v190
    %v192 = vrot.slane %v191, 1
    %v193 = vadd.f32 %v191, %v192
    %vm194 = vcmask 1048064
    %v195 = vsel %vm194, %v168, -inf
    %v196 = vsel %vm194, %v171, -inf
    %v197 = vmax.f32 %v195, %v196
    %v198 = vrot.slane %v197, 4
    %v199 = vmax.f32 %v197, %v198
    %v200 = vrot.slane %v199, 2
    %v201 = vmax.f32 %v199, %v200
    %v202 = vrot.slane %v201, 1
    %v203 = vmax.f32 %v201, %v202
    %v204 = vadd.f32 %v168, %v193
    %v205 = vadd.f32 %v171, %v193
    %vm206 = vcmp.gt.f32.partialorder %v204, 0.0
    %vm207 = vcmp.gt.f32.partialorder %v205, 0.0
    %v208 = vmul.f32 %v204, 0.2
    %v209 = vmul.f32 %v205, 0.2
    %v210 = vsel %vm206, %v204, %v208
    %v211 = vsel %vm207, %v205, %v209
    %213 = vrot.lane.b32.xlu0 %v203, 64
    %v214 = vpop.permute.xlu0 %213
    %v216 = vadd.f32 %v168, %v214
    %v217 = vadd.f32 %v171, %v214
    %vm218 = vcmp.gt.f32.partialorder %v216, 0.0
    %vm219 = vcmp.gt.f32.partialorder %v217, 0.0
    %v220 = vmul.f32 %v216, 0.2
    %v221 = vmul.f32 %v217, 0.2
    %v222 = vsel %vm218, %v216, %v220
    %v223 = vsel %vm219, %v217, %v221
    %v224 = vadd.f32 %v210, %v43
    %v225 = vadd.f32 %v211, %v44
    %v226 = vsub.f32 %v224, %v222
    %v227 = vsub.f32 %v225, %v223
    %v228 = vmul.f32 %v226, 1.442695
    %v229 = vpow.pop %v228
    %v230 = vmul.f32 %v227, 1.442695
    %v231 = vpow.pop %v230
    %v233 = vsel %vm184, %v229, 0
    %v236 = vsel %vm184, %v231, 0
    %238 = vmatprep.subr.mxu0 0.0
    %239 = vmatpush1.msra.mxu0 %v77
    %240 = vmatprep.subr.mxu0 0.0
    %241 = vmatpush1.msra.mxu0 %v78
    %242 = vmatprep.subr.mxu0 0.0
    %243 = vmatpush1.msra.mxu0 %v79
    %244 = vmatprep.subr.mxu0 0.0
    %245 = vmatpush1.msra.mxu0 %v80
    %246 = vmatprep.subr.mxu0 0.0
    %247 = vmatpush1.msra.mxu0 %v81
    %248 = vmatprep.subr.mxu0 0.0
    %249 = vmatpush1.msra.mxu0 %v82
    %250 = vmatprep.subr.mxu0 0.0
    %251 = vmatpush1.msra.mxu0 %v83
    %252 = vmatprep.subr.mxu0 0.0
    %253 = vmatpush1.msra.mxu0 %v84
    %254 = vmatprep.subr.mxu0 0.0
    %255 = vmatpush1.msra.mxu0 0.0
    %256 = vmatprep.subr.mxu0 0.0
    %257 = vmatpush1.msra.mxu0 0.0
    %258 = vmatprep.subr.mxu0 0.0
    %259 = vmatpush1.msra.mxu0 0.0
    %260 = vmatprep.subr.mxu0 0.0
    %261 = vmatpush1.msra.mxu0 0.0
    %262 = vmatprep.subr.mxu0 0.0
    %263 = vmatpush1.msra.mxu0 0.0
    %264 = vmatprep.subr.mxu0 0.0
    %265 = vmatpush1.msra.mxu0 0.0
    %266 = vmatprep.subr.mxu0 0.0
    %267 = vmatpush1.msra.mxu0 0.0
    %268 = vmatprep.subr.mxu0 0.0
    %269 = vmatpush1.msra.mxu0 0.0
    %270 = vmatprep.subr.mxu0 0.0
    %271 = vmatpush1.msra.mxu0 0.0
    %272 = vmatprep.subr.mxu0 0.0
    %273 = vmatpush1.msra.mxu0 0.0
    %274 = vmatprep.subr.mxu0 0.0
    %275 = vmatpush1.msra.mxu0 0.0
    %276 = vmatprep.subr.mxu0 0.0
    %277 = vmatpush1.msra.mxu0 0.0
    %278 = vmatprep.subr.mxu0 0.0
    %279 = vmatpush1.msra.mxu0 0.0
    %280 = vmatprep.subr.mxu0 0.0
    %281 = vmatpush1.msra.mxu0 0.0
    %282 = vmatprep.subr.mxu0 0.0
    %283 = vmatpush1.msra.mxu0 0.0
    %284 = vmatprep.subr.mxu0 0.0
    %285 = vmatpush1.msra.mxu0 0.0
    %286 = vmatprep.subr.mxu0 0.0
    %287 = vmatpush1.msra.mxu0 0.0
    %288 = vmatprep.subr.mxu0 0.0
    %289 = vmatpush1.msra.mxu0 0.0
    %290 = vmatprep.subr.mxu0 0.0
    %291 = vmatpush1.msra.mxu0 0.0
    %292 = vmatprep.subr.mxu0 0.0
    %293 = vmatpush1.msra.mxu0 0.0
    %294 = vmatprep.subr.mxu0 0.0
    %295 = vmatpush1.msra.mxu0 0.0
    %296 = vmatprep.subr.mxu0 0.0
    %297 = vmatpush1.msra.mxu0 0.0
    %298 = vmatprep.subr.mxu0 0.0
    %299 = vmatpush1.msra.mxu0 0.0
    %300 = vmatprep.subr.mxu0 0.0
    %301 = vmatpush1.msra.mxu0 0.0
    %302 = vmatprep.mubr.f32.mxu0 0.0
    %303 = vmatmul.mubr.f32.gmra.mrb[0].mxu0 %v233
    %v304 = vpop.f32.mrb[0].mxu0
    %v305 = vadd.f32 0.0, %v304
    %v306 = vpop.f32.mrb[0].mxu0
    %307 = vmatprep.mubr.f32.mxu0 0.0
    %308 = vmatmul.mubr.f32.gmra.mrb[0].mxu0 %v236
    %v309 = vpop.f32.mrb[0].mxu0
    %v310 = vadd.f32 0.0, %v309
    %v311 = vpop.f32.mrb[0].mxu0
    %312 = vdwg.mxu0
    %v313 = vmax.f32 %v305, 1e-30
    %v314 = vmax.f32 %v310, 1e-30
    %v315 = vrcp.pop %v313
    %v316 = vmul.f32 %v229, %v315
    %v317 = vrcp.pop %v314
    %v318 = vmul.f32 %v231, %v317
    %v319 = vsel %vm86, %v110, 0.0
    %v320 = vsel %vm87, %v111, 0.0
    %v321 = vsel %vm88, %v110, 0.0
    %v322 = vsel %vm89, %v111, 0.0
    %v323 = vsel %vm90, %v110, 0.0
    %v324 = vsel %vm91, %v111, 0.0
    %v325 = vsel %vm92, %v110, 0.0
    %v326 = vsel %vm93, %v111, 0.0
    %v327 = vlaneseq
    %v328 = vshrl.u32 %v327, 7
    %v329 = vsub.s32 0, %v328
    %v330 = vrot.slane %v45, %v329
    %v332 = vsel %vm184, %v316, 0
    %v335 = vsel %vm184, %v318, 0
    %337 = vmatprep.subr.mxu0 0.0
    %338 = vmatpush1.msra.mxu0 %v319
    %339 = vmatprep.subr.mxu0 0.0
    %340 = vmatpush1.msra.mxu0 %v320
    %341 = vmatprep.subr.mxu0 0.0
    %342 = vmatpush1.msra.mxu0 %v321
    %343 = vmatprep.subr.mxu0 0.0
    %344 = vmatpush1.msra.mxu0 %v322
    %345 = vmatprep.subr.mxu0 0.0
    %346 = vmatpush1.msra.mxu0 %v323
    %347 = vmatprep.subr.mxu0 0.0
    %348 = vmatpush1.msra.mxu0 %v324
    %349 = vmatprep.subr.mxu0 0.0
    %350 = vmatpush1.msra.mxu0 %v325
    %351 = vmatprep.subr.mxu0 0.0
    %352 = vmatpush1.msra.mxu0 %v326
    %353 = vmatprep.subr.mxu0 0.0
    %354 = vmatpush1.msra.mxu0 0.0
    %355 = vmatprep.subr.mxu0 0.0
    %356 = vmatpush1.msra.mxu0 0.0
    %357 = vmatprep.subr.mxu0 0.0
    %358 = vmatpush1.msra.mxu0 0.0
    %359 = vmatprep.subr.mxu0 0.0
    %360 = vmatpush1.msra.mxu0 0.0
    %361 = vmatprep.subr.mxu0 0.0
    %362 = vmatpush1.msra.mxu0 0.0
    %363 = vmatprep.subr.mxu0 0.0
    %364 = vmatpush1.msra.mxu0 0.0
    %365 = vmatprep.subr.mxu0 0.0
    %366 = vmatpush1.msra.mxu0 0.0
    %367 = vmatprep.subr.mxu0 0.0
    %368 = vmatpush1.msra.mxu0 0.0
    %369 = vmatprep.subr.mxu0 0.0
    %370 = vmatpush1.msra.mxu0 0.0
    %371 = vmatprep.subr.mxu0 0.0
    %372 = vmatpush1.msra.mxu0 0.0
    %373 = vmatprep.subr.mxu0 0.0
    %374 = vmatpush1.msra.mxu0 0.0
    %375 = vmatprep.subr.mxu0 0.0
    %376 = vmatpush1.msra.mxu0 0.0
    %377 = vmatprep.subr.mxu0 0.0
    %378 = vmatpush1.msra.mxu0 0.0
    %379 = vmatprep.subr.mxu0 0.0
    %380 = vmatpush1.msra.mxu0 0.0
    %381 = vmatprep.subr.mxu0 0.0
    %382 = vmatpush1.msra.mxu0 0.0
    %383 = vmatprep.subr.mxu0 0.0
    %384 = vmatpush1.msra.mxu0 0.0
    %385 = vmatprep.subr.mxu0 0.0
    %386 = vmatpush1.msra.mxu0 0.0
    %387 = vmatprep.subr.mxu0 0.0
    %388 = vmatpush1.msra.mxu0 0.0
    %389 = vmatprep.subr.mxu0 0.0
    %390 = vmatpush1.msra.mxu0 0.0
    %391 = vmatprep.subr.mxu0 0.0
    %392 = vmatpush1.msra.mxu0 0.0
    %393 = vmatprep.subr.mxu0 0.0
    %394 = vmatpush1.msra.mxu0 0.0
    %395 = vmatprep.subr.mxu0 0.0
    %396 = vmatpush1.msra.mxu0 0.0
    %397 = vmatprep.subr.mxu0 0.0
    %398 = vmatpush1.msra.mxu0 0.0
    %399 = vmatprep.subr.mxu0 0.0
    %400 = vmatpush1.msra.mxu0 0.0
    %401 = vmatprep.mubr.f32.mxu0 0.0
    %402 = vmatmul.mubr.f32.gmra.mrb[0].mxu0 %v332
    %v403 = vpop.f32.mrb[0].mxu0
    %v404 = vadd.f32 %v330, %v403
    %v405 = vpop.f32.mrb[0].mxu0
    %406 = vmatprep.mubr.f32.mxu0 0.0
    %407 = vmatmul.mubr.f32.gmra.mrb[0].mxu0 %v335
    %v408 = vpop.f32.mrb[0].mxu0
    %v409 = vadd.f32 %v330, %v408
    %v410 = vpop.f32.mrb[0].mxu0
    %411 = vdwg.mxu0
    %v412 = vmax.f32 %v404, 0.0
    %v413 = vmax.f32 %v409, 0.0
    %v414 = vld [vmem:[#allocation5 + $0x18] sm:$0xf]
    %v415 = vld [vmem:[#allocation5 + $0x1c] sm:$0xf]
    %v416 = vld [vmem:[#allocation5 + $0x20] sm:$0xf]
    %v417 = vld [vmem:[#allocation5 + $0x24] sm:$0xf]
    %v418 = vpack.c.bf16 %v413, %v412
    %v423 = vunpack.c.l.b16 %v414
    %v424 = vunpack.c.l.b16 %v415
    %v425 = vunpack.c.l.b16 %v416
    %v426 = vunpack.c.l.b16 %v417
    %v427 = vpack.c.b16 %v424, %v423
    %v428 = vpack.c.b16 %v426, %v425
    %v432 = vsel %vm129, %v418, 0
    %434 = vmatprep.subr.bf16.mxu0 0
    %435 = vmatpush1.bf16.msra.mxu0 %v427
    %436 = vmatprep.subr.bf16.mxu0 0
    %437 = vmatpush1.bf16.msra.mxu0 %v428
    %438 = vmatprep.subr.bf16.mxu0 0
    %439 = vmatpush1.bf16.msra.mxu0 0
    %440 = vmatprep.subr.bf16.mxu0 0
    %441 = vmatpush1.bf16.msra.mxu0 0
    %442 = vmatprep.subr.bf16.mxu0 0
    %443 = vmatpush1.bf16.msra.mxu0 0
    %444 = vmatprep.subr.bf16.mxu0 0
    %445 = vmatpush1.bf16.msra.mxu0 0
    %446 = vmatprep.subr.bf16.mxu0 0
    %447 = vmatpush1.bf16.msra.mxu0 0
    %448 = vmatprep.subr.bf16.mxu0 0
    %449 = vmatpush1.bf16.msra.mxu0 0
    %450 = vmatprep.subr.bf16.mxu0 0
    %451 = vmatpush1.bf16.msra.mxu0 0
    %452 = vmatprep.subr.bf16.mxu0 0
    %453 = vmatpush1.bf16.msra.mxu0 0
    %454 = vmatprep.subr.bf16.mxu0 0
    %455 = vmatpush1.bf16.msra.mxu0 0
    %456 = vmatprep.subr.bf16.mxu0 0
    %457 = vmatpush1.bf16.msra.mxu0 0
    %458 = vmatprep.subr.bf16.mxu0 0
    %459 = vmatpush1.bf16.msra.mxu0 0
    %460 = vmatprep.subr.bf16.mxu0 0
    %461 = vmatpush1.bf16.msra.mxu0 0
    %462 = vmatprep.subr.bf16.mxu0 0
    %463 = vmatpush1.bf16.msra.mxu0 0
    %464 = vmatprep.subr.bf16.mxu0 0
    %465 = vmatpush1.bf16.msra.mxu0 0
    %466 = vmatprep.mubr.bf16.mxu0 0
    %467 = vmatmul.mubr.bf16.gmra.mrb[0].mxu0 %v432
    %v468 = vpop.f32.mrb[0].mxu0
    %v469 = vadd.f32 0.0, %v468
    %v470 = vpop.f32.mrb[0].mxu0
    %v471 = vpop.f32.mrb[0].mxu0
    %v472 = vadd.f32 0.0, %v471
    %v473 = vpop.f32.mrb[0].mxu0
    %474 = vdwg.mxu0
    %v475 = vld [vmem:[#allocation5 + $0x28] sm:$0xf]
    %v476 = vld [vmem:[#allocation5 + $0x2c] sm:$0xf]
    %v477 = vld [vmem:[#allocation5 + $0x30] sm:$0xf]
    %v478 = vld [vmem:[#allocation5 + $0x34] sm:$0xf]
    %v479 = vpack.c.bf16 %v472, %v469
    %v484 = vunpack.c.l.b16 %v475
    %v485 = vunpack.c.l.b16 %v476
    %v486 = vunpack.c.l.b16 %v477
    %v487 = vunpack.c.l.b16 %v478
    %v488 = vpack.c.b16 %v485, %v484
    %v489 = vpack.c.b16 %v487, %v486
    %v493 = vsel %vm129, %v479, 0
    %495 = vmatprep.subr.bf16.mxu0 0
    %496 = vmatpush1.bf16.msra.mxu0 %v488
    %497 = vmatprep.subr.bf16.mxu0 0
    %498 = vmatpush1.bf16.msra.mxu0 %v489
    %499 = vmatprep.subr.bf16.mxu0 0
    %500 = vmatpush1.bf16.msra.mxu0 0
    %501 = vmatprep.subr.bf16.mxu0 0
    %502 = vmatpush1.bf16.msra.mxu0 0
    %503 = vmatprep.subr.bf16.mxu0 0
    %504 = vmatpush1.bf16.msra.mxu0 0
    %505 = vmatprep.subr.bf16.mxu0 0
    %506 = vmatpush1.bf16.msra.mxu0 0
    %507 = vmatprep.subr.bf16.mxu0 0
    %508 = vmatpush1.bf16.msra.mxu0 0
    %509 = vmatprep.subr.bf16.mxu0 0
    %510 = vmatpush1.bf16.msra.mxu0 0
    %511 = vmatprep.subr.bf16.mxu0 0
    %512 = vmatpush1.bf16.msra.mxu0 0
    %513 = vmatprep.subr.bf16.mxu0 0
    %514 = vmatpush1.bf16.msra.mxu0 0
    %515 = vmatprep.subr.bf16.mxu0 0
    %516 = vmatpush1.bf16.msra.mxu0 0
    %517 = vmatprep.subr.bf16.mxu0 0
    %518 = vmatpush1.bf16.msra.mxu0 0
    %519 = vmatprep.subr.bf16.mxu0 0
    %520 = vmatpush1.bf16.msra.mxu0 0
    %521 = vmatprep.subr.bf16.mxu0 0
    %522 = vmatpush1.bf16.msra.mxu0 0
    %523 = vmatprep.subr.bf16.mxu0 0
    %524 = vmatpush1.bf16.msra.mxu0 0
    %525 = vmatprep.subr.bf16.mxu0 0
    %526 = vmatpush1.bf16.msra.mxu0 0
    %527 = vmatprep.mubr.bf16.mxu0 0
    %528 = vmatmul.mubr.bf16.gmra.mrb[0].mxu0 %v493
    %v529 = vpop.f32.mrb[0].mxu0
    %v530 = vadd.f32 0.0, %v529
    %v531 = vpop.f32.mrb[0].mxu0
    %v532 = vpop.f32.mrb[0].mxu0
    %v533 = vadd.f32 0.0, %v532
    %v534 = vpop.f32.mrb[0].mxu0
    %535 = vdwg.mxu0
    %538 = vrot.lane.b32.xlu0 %v530, 64
    %v539 = vpop.permute.xlu0 %538
    %540 = vrot.lane.b32.xlu0 %v533, 64
    %v541 = vpop.permute.xlu0 %540
    %v544 = vsel %vm52, %v539, 0.0
    %v545 = vsel %vm53, %v541, 0.0
    %v546 = vsel %vm184, %v544, 0.0
    %v547 = vsel %vm184, %v545, 0.0
    %v548 = vadd.f32 %v546, %v547
    %v549 = vrot.slane %v548, 4
    %v550 = vadd.f32 %v548, %v549
    %v551 = vrot.slane %v550, 2
    %v552 = vadd.f32 %v550, %v551
    %v553 = vrot.slane %v552, 1
    %v554 = vadd.f32 %v552, %v553
    %v555 = vsel %vm194, %v530, -inf
    %v556 = vsel %vm194, %v533, -inf
    %v557 = vmax.f32 %v555, %v556
    %v558 = vrot.slane %v557, 4
    %v559 = vmax.f32 %v557, %v558
    %v560 = vrot.slane %v559, 2
    %v561 = vmax.f32 %v559, %v560
    %v562 = vrot.slane %v561, 1
    %v563 = vmax.f32 %v561, %v562
    %v564 = vadd.f32 %v530, %v554
    %v565 = vadd.f32 %v533, %v554
    %vm566 = vcmp.gt.f32.partialorder %v564, 0.0
    %vm567 = vcmp.gt.f32.partialorder %v565, 0.0
    %v568 = vmul.f32 %v564, 0.2
    %v569 = vmul.f32 %v565, 0.2
    %v570 = vsel %vm566, %v564, %v568
    %v571 = vsel %vm567, %v565, %v569
    %573 = vrot.lane.b32.xlu0 %v563, 64
    %v574 = vpop.permute.xlu0 %573
    %v576 = vadd.f32 %v530, %v574
    %v577 = vadd.f32 %v533, %v574
    %vm578 = vcmp.gt.f32.partialorder %v576, 0.0
    %vm579 = vcmp.gt.f32.partialorder %v577, 0.0
    %v580 = vmul.f32 %v576, 0.2
    %v581 = vmul.f32 %v577, 0.2
    %v582 = vsel %vm578, %v576, %v580
    %v583 = vsel %vm579, %v577, %v581
    %v584 = vadd.f32 %v570, %v43
    %v585 = vadd.f32 %v571, %v44
    %v586 = vsub.f32 %v584, %v582
    %v587 = vsub.f32 %v585, %v583
    %v588 = vmul.f32 %v586, 1.442695
    %v589 = vpow.pop %v588
    %v590 = vmul.f32 %v587, 1.442695
    %v591 = vpow.pop %v590
    %v593 = vsel %vm184, %v589, 0
    %v596 = vsel %vm184, %v591, 0
    %598 = vmatprep.subr.mxu0 0.0
    %599 = vmatpush1.msra.mxu0 %v77
    %600 = vmatprep.subr.mxu0 0.0
    %601 = vmatpush1.msra.mxu0 %v78
    %602 = vmatprep.subr.mxu0 0.0
    %603 = vmatpush1.msra.mxu0 %v79
    %604 = vmatprep.subr.mxu0 0.0
    %605 = vmatpush1.msra.mxu0 %v80
    %606 = vmatprep.subr.mxu0 0.0
    %607 = vmatpush1.msra.mxu0 %v81
    %608 = vmatprep.subr.mxu0 0.0
    %609 = vmatpush1.msra.mxu0 %v82
    %610 = vmatprep.subr.mxu0 0.0
    %611 = vmatpush1.msra.mxu0 %v83
    %612 = vmatprep.subr.mxu0 0.0
    %613 = vmatpush1.msra.mxu0 %v84
    %614 = vmatprep.subr.mxu0 0.0
    %615 = vmatpush1.msra.mxu0 0.0
    %616 = vmatprep.subr.mxu0 0.0
    %617 = vmatpush1.msra.mxu0 0.0
    %618 = vmatprep.subr.mxu0 0.0
    %619 = vmatpush1.msra.mxu0 0.0
    %620 = vmatprep.subr.mxu0 0.0
    %621 = vmatpush1.msra.mxu0 0.0
    %622 = vmatprep.subr.mxu0 0.0
    %623 = vmatpush1.msra.mxu0 0.0
    %624 = vmatprep.subr.mxu0 0.0
    %625 = vmatpush1.msra.mxu0 0.0
    %626 = vmatprep.subr.mxu0 0.0
    %627 = vmatpush1.msra.mxu0 0.0
    %628 = vmatprep.subr.mxu0 0.0
    %629 = vmatpush1.msra.mxu0 0.0
    %630 = vmatprep.subr.mxu0 0.0
    %631 = vmatpush1.msra.mxu0 0.0
    %632 = vmatprep.subr.mxu0 0.0
    %633 = vmatpush1.msra.mxu0 0.0
    %634 = vmatprep.subr.mxu0 0.0
    %635 = vmatpush1.msra.mxu0 0.0
    %636 = vmatprep.subr.mxu0 0.0
    %637 = vmatpush1.msra.mxu0 0.0
    %638 = vmatprep.subr.mxu0 0.0
    %639 = vmatpush1.msra.mxu0 0.0
    %640 = vmatprep.subr.mxu0 0.0
    %641 = vmatpush1.msra.mxu0 0.0
    %642 = vmatprep.subr.mxu0 0.0
    %643 = vmatpush1.msra.mxu0 0.0
    %644 = vmatprep.subr.mxu0 0.0
    %645 = vmatpush1.msra.mxu0 0.0
    %646 = vmatprep.subr.mxu0 0.0
    %647 = vmatpush1.msra.mxu0 0.0
    %648 = vmatprep.subr.mxu0 0.0
    %649 = vmatpush1.msra.mxu0 0.0
    %650 = vmatprep.subr.mxu0 0.0
    %651 = vmatpush1.msra.mxu0 0.0
    %652 = vmatprep.subr.mxu0 0.0
    %653 = vmatpush1.msra.mxu0 0.0
    %654 = vmatprep.subr.mxu0 0.0
    %655 = vmatpush1.msra.mxu0 0.0
    %656 = vmatprep.subr.mxu0 0.0
    %657 = vmatpush1.msra.mxu0 0.0
    %658 = vmatprep.subr.mxu0 0.0
    %659 = vmatpush1.msra.mxu0 0.0
    %660 = vmatprep.subr.mxu0 0.0
    %661 = vmatpush1.msra.mxu0 0.0
    %662 = vmatprep.mubr.f32.mxu0 0.0
    %663 = vmatmul.mubr.f32.gmra.mrb[0].mxu0 %v593
    %v664 = vpop.f32.mrb[0].mxu0
    %v665 = vadd.f32 0.0, %v664
    %v666 = vpop.f32.mrb[0].mxu0
    %667 = vmatprep.mubr.f32.mxu0 0.0
    %668 = vmatmul.mubr.f32.gmra.mrb[0].mxu0 %v596
    %v669 = vpop.f32.mrb[0].mxu0
    %v670 = vadd.f32 0.0, %v669
    %v671 = vpop.f32.mrb[0].mxu0
    %672 = vdwg.mxu0
    %v673 = vmax.f32 %v665, 1e-30
    %v674 = vmax.f32 %v670, 1e-30
    %v675 = vrcp.pop %v673
    %v676 = vmul.f32 %v589, %v675
    %v677 = vrcp.pop %v674
    %v678 = vmul.f32 %v591, %v677
    %v679 = vsel %vm86, %v469, 0.0
    %v680 = vsel %vm87, %v472, 0.0
    %v681 = vsel %vm88, %v469, 0.0
    %v682 = vsel %vm89, %v472, 0.0
    %v683 = vsel %vm90, %v469, 0.0
    %v684 = vsel %vm91, %v472, 0.0
    %v685 = vsel %vm92, %v469, 0.0
    %v686 = vsel %vm93, %v472, 0.0
    %v687 = vlaneseq
    %v688 = vshrl.u32 %v687, 7
    %v689 = vsub.s32 1, %v688
    %v690 = vrot.slane %v45, %v689
    %v692 = vsel %vm184, %v676, 0
    %v695 = vsel %vm184, %v678, 0
    %697 = vmatprep.subr.mxu0 0.0
    %698 = vmatpush1.msra.mxu0 %v679
    %699 = vmatprep.subr.mxu0 0.0
    %700 = vmatpush1.msra.mxu0 %v680
    %701 = vmatprep.subr.mxu0 0.0
    %702 = vmatpush1.msra.mxu0 %v681
    %703 = vmatprep.subr.mxu0 0.0
    %704 = vmatpush1.msra.mxu0 %v682
    %705 = vmatprep.subr.mxu0 0.0
    %706 = vmatpush1.msra.mxu0 %v683
    %707 = vmatprep.subr.mxu0 0.0
    %708 = vmatpush1.msra.mxu0 %v684
    %709 = vmatprep.subr.mxu0 0.0
    %710 = vmatpush1.msra.mxu0 %v685
    %711 = vmatprep.subr.mxu0 0.0
    %712 = vmatpush1.msra.mxu0 %v686
    %713 = vmatprep.subr.mxu0 0.0
    %714 = vmatpush1.msra.mxu0 0.0
    %715 = vmatprep.subr.mxu0 0.0
    %716 = vmatpush1.msra.mxu0 0.0
    %717 = vmatprep.subr.mxu0 0.0
    %718 = vmatpush1.msra.mxu0 0.0
    %719 = vmatprep.subr.mxu0 0.0
    %720 = vmatpush1.msra.mxu0 0.0
    %721 = vmatprep.subr.mxu0 0.0
    %722 = vmatpush1.msra.mxu0 0.0
    %723 = vmatprep.subr.mxu0 0.0
    %724 = vmatpush1.msra.mxu0 0.0
    %725 = vmatprep.subr.mxu0 0.0
    %726 = vmatpush1.msra.mxu0 0.0
    %727 = vmatprep.subr.mxu0 0.0
    %728 = vmatpush1.msra.mxu0 0.0
    %729 = vmatprep.subr.mxu0 0.0
    %730 = vmatpush1.msra.mxu0 0.0
    %731 = vmatprep.subr.mxu0 0.0
    %732 = vmatpush1.msra.mxu0 0.0
    %733 = vmatprep.subr.mxu0 0.0
    %734 = vmatpush1.msra.mxu0 0.0
    %735 = vmatprep.subr.mxu0 0.0
    %736 = vmatpush1.msra.mxu0 0.0
    %737 = vmatprep.subr.mxu0 0.0
    %738 = vmatpush1.msra.mxu0 0.0
    %739 = vmatprep.subr.mxu0 0.0
    %740 = vmatpush1.msra.mxu0 0.0
    %741 = vmatprep.subr.mxu0 0.0
    %742 = vmatpush1.msra.mxu0 0.0
    %743 = vmatprep.subr.mxu0 0.0
    %744 = vmatpush1.msra.mxu0 0.0
    %745 = vmatprep.subr.mxu0 0.0
    %746 = vmatpush1.msra.mxu0 0.0
    %747 = vmatprep.subr.mxu0 0.0
    %748 = vmatpush1.msra.mxu0 0.0
    %749 = vmatprep.subr.mxu0 0.0
    %750 = vmatpush1.msra.mxu0 0.0
    %751 = vmatprep.subr.mxu0 0.0
    %752 = vmatpush1.msra.mxu0 0.0
    %753 = vmatprep.subr.mxu0 0.0
    %754 = vmatpush1.msra.mxu0 0.0
    %755 = vmatprep.subr.mxu0 0.0
    %756 = vmatpush1.msra.mxu0 0.0
    %757 = vmatprep.subr.mxu0 0.0
    %758 = vmatpush1.msra.mxu0 0.0
    %759 = vmatprep.subr.mxu0 0.0
    %760 = vmatpush1.msra.mxu0 0.0
    %761 = vmatprep.mubr.f32.mxu0 0.0
    %762 = vmatmul.mubr.f32.gmra.mrb[0].mxu0 %v692
    %v763 = vpop.f32.mrb[0].mxu0
    %v764 = vadd.f32 %v690, %v763
    %v765 = vpop.f32.mrb[0].mxu0
    %766 = vmatprep.mubr.f32.mxu0 0.0
    %767 = vmatmul.mubr.f32.gmra.mrb[0].mxu0 %v695
    %v768 = vpop.f32.mrb[0].mxu0
    %v769 = vadd.f32 %v690, %v768
    %v770 = vpop.f32.mrb[0].mxu0
    %771 = vdwg.mxu0
    %v772 = vmax.f32 %v764, 0.0
    %v773 = vmax.f32 %v769, 0.0
    %v774 = vld [vmem:[#allocation5 + $0x38] sm:$0xf]
    %v775 = vld [vmem:[#allocation5 + $0x3c] sm:$0xf]
    %v776 = vld [vmem:[#allocation5 + $0x40] sm:$0xf]
    %v777 = vld [vmem:[#allocation5 + $0x44] sm:$0xf]
    %v778 = vpack.c.bf16 %v773, %v772
    %v783 = vunpack.c.l.b16 %v774
    %v784 = vunpack.c.l.b16 %v775
    %v785 = vunpack.c.l.b16 %v776
    %v786 = vunpack.c.l.b16 %v777
    %v787 = vpack.c.b16 %v784, %v783
    %v788 = vpack.c.b16 %v786, %v785
    %v792 = vsel %vm129, %v778, 0
    %794 = vmatprep.subr.bf16.mxu0 0
    %795 = vmatpush1.bf16.msra.mxu0 %v787
    %796 = vmatprep.subr.bf16.mxu0 0
    %797 = vmatpush1.bf16.msra.mxu0 %v788
    %798 = vmatprep.subr.bf16.mxu0 0
    %799 = vmatpush1.bf16.msra.mxu0 0
    %800 = vmatprep.subr.bf16.mxu0 0
    %801 = vmatpush1.bf16.msra.mxu0 0
    %802 = vmatprep.subr.bf16.mxu0 0
    %803 = vmatpush1.bf16.msra.mxu0 0
    %804 = vmatprep.subr.bf16.mxu0 0
    %805 = vmatpush1.bf16.msra.mxu0 0
    %806 = vmatprep.subr.bf16.mxu0 0
    %807 = vmatpush1.bf16.msra.mxu0 0
    %808 = vmatprep.subr.bf16.mxu0 0
    %809 = vmatpush1.bf16.msra.mxu0 0
    %810 = vmatprep.subr.bf16.mxu0 0
    %811 = vmatpush1.bf16.msra.mxu0 0
    %812 = vmatprep.subr.bf16.mxu0 0
    %813 = vmatpush1.bf16.msra.mxu0 0
    %814 = vmatprep.subr.bf16.mxu0 0
    %815 = vmatpush1.bf16.msra.mxu0 0
    %816 = vmatprep.subr.bf16.mxu0 0
    %817 = vmatpush1.bf16.msra.mxu0 0
    %818 = vmatprep.subr.bf16.mxu0 0
    %819 = vmatpush1.bf16.msra.mxu0 0
    %820 = vmatprep.subr.bf16.mxu0 0
    %821 = vmatpush1.bf16.msra.mxu0 0
    %822 = vmatprep.subr.bf16.mxu0 0
    %823 = vmatpush1.bf16.msra.mxu0 0
    %824 = vmatprep.subr.bf16.mxu0 0
    %825 = vmatpush1.bf16.msra.mxu0 0
    %826 = vmatprep.mubr.bf16.mxu0 0
    %827 = vmatmul.mubr.bf16.gmra.mrb[0].mxu0 %v792
    %v828 = vpop.f32.mrb[0].mxu0
    %v829 = vadd.f32 0.0, %v828
    %v830 = vpop.f32.mrb[0].mxu0
    %v831 = vpop.f32.mrb[0].mxu0
    %v832 = vadd.f32 0.0, %v831
    %v833 = vpop.f32.mrb[0].mxu0
    %834 = vdwg.mxu0
    %v835 = vld [vmem:[#allocation5 + $0x48] sm:$0xf]
    %v836 = vld [vmem:[#allocation5 + $0x4c] sm:$0xf]
    %v837 = vld [vmem:[#allocation5 + $0x50] sm:$0xf]
    %v838 = vld [vmem:[#allocation5 + $0x54] sm:$0xf]
    %v839 = vpack.c.bf16 %v832, %v829
    %v844 = vunpack.c.l.b16 %v835
    %v845 = vunpack.c.l.b16 %v836
    %v846 = vunpack.c.l.b16 %v837
    %v847 = vunpack.c.l.b16 %v838
    %v848 = vpack.c.b16 %v845, %v844
    %v849 = vpack.c.b16 %v847, %v846
    %v853 = vsel %vm129, %v839, 0
    %855 = vmatprep.subr.bf16.mxu0 0
    %856 = vmatpush1.bf16.msra.mxu0 %v848
    %857 = vmatprep.subr.bf16.mxu0 0
    %858 = vmatpush1.bf16.msra.mxu0 %v849
    %859 = vmatprep.subr.bf16.mxu0 0
    %860 = vmatpush1.bf16.msra.mxu0 0
    %861 = vmatprep.subr.bf16.mxu0 0
    %862 = vmatpush1.bf16.msra.mxu0 0
    %863 = vmatprep.subr.bf16.mxu0 0
    %864 = vmatpush1.bf16.msra.mxu0 0
    %865 = vmatprep.subr.bf16.mxu0 0
    %866 = vmatpush1.bf16.msra.mxu0 0
    %867 = vmatprep.subr.bf16.mxu0 0
    %868 = vmatpush1.bf16.msra.mxu0 0
    %869 = vmatprep.subr.bf16.mxu0 0
    %870 = vmatpush1.bf16.msra.mxu0 0
    %871 = vmatprep.subr.bf16.mxu0 0
    %872 = vmatpush1.bf16.msra.mxu0 0
    %873 = vmatprep.subr.bf16.mxu0 0
    %874 = vmatpush1.bf16.msra.mxu0 0
    %875 = vmatprep.subr.bf16.mxu0 0
    %876 = vmatpush1.bf16.msra.mxu0 0
    %877 = vmatprep.subr.bf16.mxu0 0
    %878 = vmatpush1.bf16.msra.mxu0 0
    %879 = vmatprep.subr.bf16.mxu0 0
    %880 = vmatpush1.bf16.msra.mxu0 0
    %881 = vmatprep.subr.bf16.mxu0 0
    %882 = vmatpush1.bf16.msra.mxu0 0
    %883 = vmatprep.subr.bf16.mxu0 0
    %884 = vmatpush1.bf16.msra.mxu0 0
    %885 = vmatprep.subr.bf16.mxu0 0
    %886 = vmatpush1.bf16.msra.mxu0 0
    %887 = vmatprep.mubr.bf16.mxu0 0
    %888 = vmatmul.mubr.bf16.gmra.mrb[0].mxu0 %v853
    %v889 = vpop.f32.mrb[0].mxu0
    %v890 = vadd.f32 0.0, %v889
    %v891 = vpop.f32.mrb[0].mxu0
    %v892 = vpop.f32.mrb[0].mxu0
    %v893 = vadd.f32 0.0, %v892
    %v894 = vpop.f32.mrb[0].mxu0
    %895 = vdwg.mxu0
    %898 = vrot.lane.b32.xlu0 %v890, 64
    %v899 = vpop.permute.xlu0 %898
    %900 = vrot.lane.b32.xlu0 %v893, 64
    %v901 = vpop.permute.xlu0 %900
    %v904 = vsel %vm52, %v899, 0.0
    %v905 = vsel %vm53, %v901, 0.0
    %v906 = vsel %vm184, %v904, 0.0
    %v907 = vsel %vm184, %v905, 0.0
    %v908 = vadd.f32 %v906, %v907
    %v909 = vrot.slane %v908, 4
    %v910 = vadd.f32 %v908, %v909
    %v911 = vrot.slane %v910, 2
    %v912 = vadd.f32 %v910, %v911
    %v913 = vrot.slane %v912, 1
    %v914 = vadd.f32 %v912, %v913
    %v915 = vsel %vm194, %v890, -inf
    %v916 = vsel %vm194, %v893, -inf
    %v917 = vmax.f32 %v915, %v916
    %v918 = vrot.slane %v917, 4
    %v919 = vmax.f32 %v917, %v918
    %v920 = vrot.slane %v919, 2
    %v921 = vmax.f32 %v919, %v920
    %v922 = vrot.slane %v921, 1
    %v923 = vmax.f32 %v921, %v922
    %v924 = vadd.f32 %v890, %v914
    %v925 = vadd.f32 %v893, %v914
    %vm926 = vcmp.gt.f32.partialorder %v924, 0.0
    %vm927 = vcmp.gt.f32.partialorder %v925, 0.0
    %v928 = vmul.f32 %v924, 0.2
    %v929 = vmul.f32 %v925, 0.2
    %v930 = vsel %vm926, %v924, %v928
    %v931 = vsel %vm927, %v925, %v929
    %933 = vrot.lane.b32.xlu0 %v923, 64
    %v934 = vpop.permute.xlu0 %933
    %v936 = vadd.f32 %v890, %v934
    %v937 = vadd.f32 %v893, %v934
    %vm938 = vcmp.gt.f32.partialorder %v936, 0.0
    %vm939 = vcmp.gt.f32.partialorder %v937, 0.0
    %v940 = vmul.f32 %v936, 0.2
    %v941 = vmul.f32 %v937, 0.2
    %v942 = vsel %vm938, %v936, %v940
    %v943 = vsel %vm939, %v937, %v941
    %v944 = vadd.f32 %v930, %v43
    %v945 = vadd.f32 %v931, %v44
    %v946 = vsub.f32 %v944, %v942
    %v947 = vsub.f32 %v945, %v943
    %v948 = vmul.f32 %v946, 1.442695
    %v949 = vpow.pop %v948
    %v950 = vmul.f32 %v947, 1.442695
    %v951 = vpow.pop %v950
    %v953 = vsel %vm184, %v949, 0
    %v956 = vsel %vm184, %v951, 0
    %958 = vmatprep.subr.mxu0 0.0
    %959 = vmatpush1.msra.mxu0 %v77
    %960 = vmatprep.subr.mxu0 0.0
    %961 = vmatpush1.msra.mxu0 %v78
    %962 = vmatprep.subr.mxu0 0.0
    %963 = vmatpush1.msra.mxu0 %v79
    %964 = vmatprep.subr.mxu0 0.0
    %965 = vmatpush1.msra.mxu0 %v80
    %966 = vmatprep.subr.mxu0 0.0
    %967 = vmatpush1.msra.mxu0 %v81
    %968 = vmatprep.subr.mxu0 0.0
    %969 = vmatpush1.msra.mxu0 %v82
    %970 = vmatprep.subr.mxu0 0.0
    %971 = vmatpush1.msra.mxu0 %v83
    %972 = vmatprep.subr.mxu0 0.0
    %973 = vmatpush1.msra.mxu0 %v84
    %974 = vmatprep.subr.mxu0 0.0
    %975 = vmatpush1.msra.mxu0 0.0
    %976 = vmatprep.subr.mxu0 0.0
    %977 = vmatpush1.msra.mxu0 0.0
    %978 = vmatprep.subr.mxu0 0.0
    %979 = vmatpush1.msra.mxu0 0.0
    %980 = vmatprep.subr.mxu0 0.0
    %981 = vmatpush1.msra.mxu0 0.0
    %982 = vmatprep.subr.mxu0 0.0
    %983 = vmatpush1.msra.mxu0 0.0
    %984 = vmatprep.subr.mxu0 0.0
    %985 = vmatpush1.msra.mxu0 0.0
    %986 = vmatprep.subr.mxu0 0.0
    %987 = vmatpush1.msra.mxu0 0.0
    %988 = vmatprep.subr.mxu0 0.0
    %989 = vmatpush1.msra.mxu0 0.0
    %990 = vmatprep.subr.mxu0 0.0
    %991 = vmatpush1.msra.mxu0 0.0
    %992 = vmatprep.subr.mxu0 0.0
    %993 = vmatpush1.msra.mxu0 0.0
    %994 = vmatprep.subr.mxu0 0.0
    %995 = vmatpush1.msra.mxu0 0.0
    %996 = vmatprep.subr.mxu0 0.0
    %997 = vmatpush1.msra.mxu0 0.0
    %998 = vmatprep.subr.mxu0 0.0
    %999 = vmatpush1.msra.mxu0 0.0
    %1000 = vmatprep.subr.mxu0 0.0
    %1001 = vmatpush1.msra.mxu0 0.0
    %1002 = vmatprep.subr.mxu0 0.0
    %1003 = vmatpush1.msra.mxu0 0.0
    %1004 = vmatprep.subr.mxu0 0.0
    %1005 = vmatpush1.msra.mxu0 0.0
    %1006 = vmatprep.subr.mxu0 0.0
    %1007 = vmatpush1.msra.mxu0 0.0
    %1008 = vmatprep.subr.mxu0 0.0
    %1009 = vmatpush1.msra.mxu0 0.0
    %1010 = vmatprep.subr.mxu0 0.0
    %1011 = vmatpush1.msra.mxu0 0.0
    %1012 = vmatprep.subr.mxu0 0.0
    %1013 = vmatpush1.msra.mxu0 0.0
    %1014 = vmatprep.subr.mxu0 0.0
    %1015 = vmatpush1.msra.mxu0 0.0
    %1016 = vmatprep.subr.mxu0 0.0
    %1017 = vmatpush1.msra.mxu0 0.0
    %1018 = vmatprep.subr.mxu0 0.0
    %1019 = vmatpush1.msra.mxu0 0.0
    %1020 = vmatprep.subr.mxu0 0.0
    %1021 = vmatpush1.msra.mxu0 0.0
    %1022 = vmatprep.mubr.f32.mxu0 0.0
    %1023 = vmatmul.mubr.f32.gmra.mrb[0].mxu0 %v953
    %v1024 = vpop.f32.mrb[0].mxu0
    %v1025 = vadd.f32 0.0, %v1024
    %v1026 = vpop.f32.mrb[0].mxu0
    %1027 = vmatprep.mubr.f32.mxu0 0.0
    %1028 = vmatmul.mubr.f32.gmra.mrb[0].mxu0 %v956
    %v1029 = vpop.f32.mrb[0].mxu0
    %v1030 = vadd.f32 0.0, %v1029
    %v1031 = vpop.f32.mrb[0].mxu0
    %1032 = vdwg.mxu0
    %v1033 = vmax.f32 %v1025, 1e-30
    %v1034 = vmax.f32 %v1030, 1e-30
    %v1035 = vrcp.pop %v1033
    %v1036 = vmul.f32 %v949, %v1035
    %v1037 = vrcp.pop %v1034
    %v1038 = vmul.f32 %v951, %v1037
    %v1039 = vsel %vm86, %v829, 0.0
    %v1040 = vsel %vm87, %v832, 0.0
    %v1041 = vsel %vm88, %v829, 0.0
    %v1042 = vsel %vm89, %v832, 0.0
    %v1043 = vsel %vm90, %v829, 0.0
    %v1044 = vsel %vm91, %v832, 0.0
    %v1045 = vsel %vm92, %v829, 0.0
    %v1046 = vsel %vm93, %v832, 0.0
    %v1047 = vlaneseq
    %v1048 = vshrl.u32 %v1047, 7
    %v1049 = vsub.s32 2, %v1048
    %v1050 = vrot.slane %v45, %v1049
    %v1052 = vsel %vm184, %v1036, 0
    %v1055 = vsel %vm184, %v1038, 0
    %1057 = vmatprep.subr.mxu0 0.0
    %1058 = vmatpush1.msra.mxu0 %v1039
    %1059 = vmatprep.subr.mxu0 0.0
    %1060 = vmatpush1.msra.mxu0 %v1040
    %1061 = vmatprep.subr.mxu0 0.0
    %1062 = vmatpush1.msra.mxu0 %v1041
    %1063 = vmatprep.subr.mxu0 0.0
    %1064 = vmatpush1.msra.mxu0 %v1042
    %1065 = vmatprep.subr.mxu0 0.0
    %1066 = vmatpush1.msra.mxu0 %v1043
    %1067 = vmatprep.subr.mxu0 0.0
    %1068 = vmatpush1.msra.mxu0 %v1044
    %1069 = vmatprep.subr.mxu0 0.0
    %1070 = vmatpush1.msra.mxu0 %v1045
    %1071 = vmatprep.subr.mxu0 0.0
    %1072 = vmatpush1.msra.mxu0 %v1046
    %1073 = vmatprep.subr.mxu0 0.0
    %1074 = vmatpush1.msra.mxu0 0.0
    %1075 = vmatprep.subr.mxu0 0.0
    %1076 = vmatpush1.msra.mxu0 0.0
    %1077 = vmatprep.subr.mxu0 0.0
    %1078 = vmatpush1.msra.mxu0 0.0
    %1079 = vmatprep.subr.mxu0 0.0
    %1080 = vmatpush1.msra.mxu0 0.0
    %1081 = vmatprep.subr.mxu0 0.0
    %1082 = vmatpush1.msra.mxu0 0.0
    %1083 = vmatprep.subr.mxu0 0.0
    %1084 = vmatpush1.msra.mxu0 0.0
    %1085 = vmatprep.subr.mxu0 0.0
    %1086 = vmatpush1.msra.mxu0 0.0
    %1087 = vmatprep.subr.mxu0 0.0
    %1088 = vmatpush1.msra.mxu0 0.0
    %1089 = vmatprep.subr.mxu0 0.0
    %1090 = vmatpush1.msra.mxu0 0.0
    %1091 = vmatprep.subr.mxu0 0.0
    %1092 = vmatpush1.msra.mxu0 0.0
    %1093 = vmatprep.subr.mxu0 0.0
    %1094 = vmatpush1.msra.mxu0 0.0
    %1095 = vmatprep.subr.mxu0 0.0
    %1096 = vmatpush1.msra.mxu0 0.0
    %1097 = vmatprep.subr.mxu0 0.0
    %1098 = vmatpush1.msra.mxu0 0.0
    %1099 = vmatprep.subr.mxu0 0.0
    %1100 = vmatpush1.msra.mxu0 0.0
    %1101 = vmatprep.subr.mxu0 0.0
    %1102 = vmatpush1.msra.mxu0 0.0
    %1103 = vmatprep.subr.mxu0 0.0
    %1104 = vmatpush1.msra.mxu0 0.0
    %1105 = vmatprep.subr.mxu0 0.0
    %1106 = vmatpush1.msra.mxu0 0.0
    %1107 = vmatprep.subr.mxu0 0.0
    %1108 = vmatpush1.msra.mxu0 0.0
    %1109 = vmatprep.subr.mxu0 0.0
    %1110 = vmatpush1.msra.mxu0 0.0
    %1111 = vmatprep.subr.mxu0 0.0
    %1112 = vmatpush1.msra.mxu0 0.0
    %1113 = vmatprep.subr.mxu0 0.0
    %1114 = vmatpush1.msra.mxu0 0.0
    %1115 = vmatprep.subr.mxu0 0.0
    %1116 = vmatpush1.msra.mxu0 0.0
    %1117 = vmatprep.subr.mxu0 0.0
    %1118 = vmatpush1.msra.mxu0 0.0
    %1119 = vmatprep.subr.mxu0 0.0
    %1120 = vmatpush1.msra.mxu0 0.0
    %1121 = vmatprep.mubr.f32.mxu0 0.0
    %1122 = vmatmul.mubr.f32.gmra.mrb[0].mxu0 %v1052
    %v1123 = vpop.f32.mrb[0].mxu0
    %v1124 = vadd.f32 %v1050, %v1123
    %v1125 = vpop.f32.mrb[0].mxu0
    %1126 = vmatprep.mubr.f32.mxu0 0.0
    %1127 = vmatmul.mubr.f32.gmra.mrb[0].mxu0 %v1055
    %v1128 = vpop.f32.mrb[0].mxu0
    %v1129 = vadd.f32 %v1050, %v1128
    %v1130 = vpop.f32.mrb[0].mxu0
    %1131 = vdwg.mxu0
    %v1132 = vmax.f32 %v1124, 0.0
    %v1133 = vmax.f32 %v1129, 0.0
    %v1134 = vld [vmem:[#allocation5 + $0x58] sm:$0xf]
    %v1135 = vld [vmem:[#allocation5 + $0x5c] sm:$0xf]
    %v1136 = vld [vmem:[#allocation5 + $0x60] sm:$0xf]
    %v1137 = vld [vmem:[#allocation5 + $0x64] sm:$0xf]
    %v1138 = vpack.c.bf16 %v1133, %v1132
    %v1139 = vlaneseq
    %v1140 = vshrl.u32 %v1139, 7
    %v1141 = vsub.s32 3, %v1140
    %v1142 = vrot.slane %v45, %v1141
    %v1147 = vunpack.c.l.b16 %v1134
    %v1148 = vunpack.c.l.b16 %v1135
    %v1149 = vunpack.c.l.b16 %v1136
    %v1150 = vunpack.c.l.b16 %v1137
    %v1151 = vpack.c.b16 %v1148, %v1147
    %v1152 = vpack.c.b16 %v1150, %v1149
    %v1156 = vsel %vm129, %v1138, 0
    %1158 = vmatprep.subr.bf16.mxu0 0
    %1159 = vmatpush1.bf16.msra.mxu0 %v1151
    %1160 = vmatprep.subr.bf16.mxu0 0
    %1161 = vmatpush1.bf16.msra.mxu0 %v1152
    %1162 = vmatprep.subr.bf16.mxu0 0
    %1163 = vmatpush1.bf16.msra.mxu0 0
    %1164 = vmatprep.subr.bf16.mxu0 0
    %1165 = vmatpush1.bf16.msra.mxu0 0
    %1166 = vmatprep.subr.bf16.mxu0 0
    %1167 = vmatpush1.bf16.msra.mxu0 0
    %1168 = vmatprep.subr.bf16.mxu0 0
    %1169 = vmatpush1.bf16.msra.mxu0 0
    %1170 = vmatprep.subr.bf16.mxu0 0
    %1171 = vmatpush1.bf16.msra.mxu0 0
    %1172 = vmatprep.subr.bf16.mxu0 0
    %1173 = vmatpush1.bf16.msra.mxu0 0
    %1174 = vmatprep.subr.bf16.mxu0 0
    %1175 = vmatpush1.bf16.msra.mxu0 0
    %1176 = vmatprep.subr.bf16.mxu0 0
    %1177 = vmatpush1.bf16.msra.mxu0 0
    %1178 = vmatprep.subr.bf16.mxu0 0
    %1179 = vmatpush1.bf16.msra.mxu0 0
    %1180 = vmatprep.subr.bf16.mxu0 0
    %1181 = vmatpush1.bf16.msra.mxu0 0
    %1182 = vmatprep.subr.bf16.mxu0 0
    %1183 = vmatpush1.bf16.msra.mxu0 0
    %1184 = vmatprep.subr.bf16.mxu0 0
    %1185 = vmatpush1.bf16.msra.mxu0 0
    %1186 = vmatprep.subr.bf16.mxu0 0
    %1187 = vmatpush1.bf16.msra.mxu0 0
    %1188 = vmatprep.subr.bf16.mxu0 0
    %1189 = vmatpush1.bf16.msra.mxu0 0
    %1190 = vmatprep.mubr.bf16.mxu0 0
    %1191 = vmatmul.mubr.bf16.gmra.mrb[0].mxu0 %v1156
    %v1192 = vpop.f32.mrb[0].mxu0
    %v1193 = vadd.f32 %v1142, %v1192
    %v1194 = vpop.f32.mrb[0].mxu0
    %v1195 = vpop.f32.mrb[0].mxu0
    %v1196 = vadd.f32 %v1142, %v1195
    %v1197 = vpop.f32.mrb[0].mxu0
    %1198 = vdwg.mxu0
    %v1199 = vmax.f32 %v1193, 0.0
    %v1200 = vmax.f32 %v1196, 0.0
    %v1201 = vld [vmem:[#allocation5 + $0x68] sm:$0xf]
    %v1202 = vld [vmem:[#allocation5 + $0x6c] sm:$0xf]
    %v1203 = vld [vmem:[#allocation5 + $0x70] sm:$0xf]
    %v1204 = vld [vmem:[#allocation5 + $0x74] sm:$0xf]
    %v1205 = vld [vmem:[#allocation5 + $0x78] sm:$0xf]
    %v1206 = vld [vmem:[#allocation5 + $0x7c] sm:$0xf]
    %v1207 = vld [vmem:[#allocation5 + $0x80] sm:$0xf]
    %v1208 = vld [vmem:[#allocation5 + $0x84] sm:$0xf]
    %v1209 = vld [vmem:[#allocation5 + $0x88] sm:$0xf]
    %v1210 = vld [vmem:[#allocation5 + $0x8c] sm:$0xf]
    %v1211 = vld [vmem:[#allocation5 + $0x90] sm:$0xf]
    %v1212 = vld [vmem:[#allocation5 + $0x94] sm:$0xf]
    %v1213 = vld [vmem:[#allocation5 + $0x98] sm:$0xf]
    %v1214 = vld [vmem:[#allocation5 + $0x9c] sm:$0xf]
    %v1215 = vld [vmem:[#allocation5 + $0xa0] sm:$0xf]
    %v1216 = vld [vmem:[#allocation5 + $0xa4] sm:$0xf]
    %v1217 = vpack.c.bf16 %v1200, %v1199
    %v1218 = vlaneseq
    %v1219 = vshrl.u32 %v1218, 7
    %v1220 = vsub.s32 4, %v1219
    %v1221 = vrot.slane %v45, %v1220
    %v1238 = vunpack.c.l.b16 %v1201
    %v1239 = vunpack.c.l.b16 %v1202
    %v1240 = vunpack.c.l.b16 %v1203
    %v1241 = vunpack.c.l.b16 %v1204
    %v1242 = vunpack.c.l.b16 %v1205
    %v1243 = vunpack.c.l.b16 %v1206
    %v1244 = vunpack.c.l.b16 %v1207
    %v1245 = vunpack.c.l.b16 %v1208
    %v1246 = vunpack.c.l.b16 %v1209
    %v1247 = vunpack.c.l.b16 %v1210
    %v1248 = vunpack.c.l.b16 %v1211
    %v1249 = vunpack.c.l.b16 %v1212
    %v1250 = vunpack.c.l.b16 %v1213
    %v1251 = vunpack.c.l.b16 %v1214
    %v1252 = vunpack.c.l.b16 %v1215
    %v1253 = vunpack.c.l.b16 %v1216
    %v1254 = vpack.c.b16 %v1239, %v1238
    %v1255 = vpack.c.b16 %v1241, %v1240
    %v1256 = vpack.c.b16 %v1243, %v1242
    %v1257 = vpack.c.b16 %v1245, %v1244
    %v1258 = vpack.c.b16 %v1247, %v1246
    %v1259 = vpack.c.b16 %v1249, %v1248
    %v1260 = vpack.c.b16 %v1251, %v1250
    %v1261 = vpack.c.b16 %v1253, %v1252
    %1270 = vmatprep.subr.bf16.mxu0 0
    %1271 = vmatpush1.bf16.msra.mxu0 %v1254
    %1272 = vmatprep.subr.bf16.mxu0 0
    %1273 = vmatpush1.bf16.msra.mxu0 %v1255
    %1274 = vmatprep.subr.bf16.mxu0 0
    %1275 = vmatpush1.bf16.msra.mxu0 %v1256
    %1276 = vmatprep.subr.bf16.mxu0 0
    %1277 = vmatpush1.bf16.msra.mxu0 %v1257
    %1278 = vmatprep.subr.bf16.mxu0 0
    %1279 = vmatpush1.bf16.msra.mxu0 %v1258
    %1280 = vmatprep.subr.bf16.mxu0 0
    %1281 = vmatpush1.bf16.msra.mxu0 %v1259
    %1282 = vmatprep.subr.bf16.mxu0 0
    %1283 = vmatpush1.bf16.msra.mxu0 %v1260
    %1284 = vmatprep.subr.bf16.mxu0 0
    %1285 = vmatpush1.bf16.msra.mxu0 %v1261
    %1286 = vmatprep.subr.bf16.mxu0 0
    %1287 = vmatpush1.bf16.msra.mxu0 0
    %1288 = vmatprep.subr.bf16.mxu0 0
    %1289 = vmatpush1.bf16.msra.mxu0 0
    %1290 = vmatprep.subr.bf16.mxu0 0
    %1291 = vmatpush1.bf16.msra.mxu0 0
    %1292 = vmatprep.subr.bf16.mxu0 0
    %1293 = vmatpush1.bf16.msra.mxu0 0
    %1294 = vmatprep.subr.bf16.mxu0 0
    %1295 = vmatpush1.bf16.msra.mxu0 0
    %1296 = vmatprep.subr.bf16.mxu0 0
    %1297 = vmatpush1.bf16.msra.mxu0 0
    %1298 = vmatprep.subr.bf16.mxu0 0
    %1299 = vmatpush1.bf16.msra.mxu0 0
    %1300 = vmatprep.subr.bf16.mxu0 0
    %1301 = vmatpush1.bf16.msra.mxu0 0
    %1302 = vmatprep.mubr.bf16.mxu0 0
    %1303 = vmatmul.mubr.bf16.gmra.mrb[0].mxu0 %v1217
    %v1304 = vpop.f32.mrb[0].mxu0
    %v1305 = vadd.f32 %v1221, %v1304
    %v1306 = vpop.f32.mrb[0].mxu0
    %v1307 = vpop.f32.mrb[0].mxu0
    %v1308 = vadd.f32 %v1221, %v1307
    %v1309 = vpop.f32.mrb[0].mxu0
    %1310 = vdwg.mxu0
    %vm1311 = vcmp.lt.s32.totalorder %v50, 5
    %v1312 = vsel %vm1311, %v1305, -1e+30
    %v1313 = vsel %vm1311, %v1308, -1e+30
    %1314 = vmax.xlane.f32.xlu0 %v1312
    %v1315 = vpop.xlane.xlu0 %1314
    %1316 = vmax.xlane.f32.xlu0 %v1313
    %v1317 = vpop.xlane.xlu0 %1316
    %v1318 = vsub.f32 %v1312, %v1315
    %v1319 = vsub.f32 %v1313, %v1317
    %v1320 = vmul.f32 %v1318, 1.442695
    %v1321 = vpow.pop %v1320
    %v1322 = vmul.f32 %v1319, 1.442695
    %v1323 = vpow.pop %v1322
    %1324 = vadd.xlane.f32.xlu0 %v1321
    %v1325 = vpop.xlane.xlu0 %1324
    %1326 = vadd.xlane.f32.xlu0 %v1323
    %v1327 = vpop.xlane.xlu0 %1326
    %v1328 = vlog2.pop %v1325
    %v1329 = vmul.f32 %v1328, 0.6931472
    %v1330 = vlog2.pop %v1327
    %v1331 = vmul.f32 %v1330, 0.6931472
    %v1332 = vsub.f32 %v1318, %v1329
    %v1333 = vsub.f32 %v1319, %v1331
    %1334 = vst [vmem:[#allocation7] sm:$0xff] %v1332
    %1335 = vst [vmem:[#allocation7 + $0x8] sm:$0xff] %v1333
    // Predicated region
    $region18: #{tpu_custom_call.1} parent=1 // pred_check
      _
    $region19: #{tpu_custom_call.1} parent=1 // pred_check_branch
      %1337 = sbr.rel (0) target = $region21
    $region20: #{tpu_custom_call.1} parent=1 // pred_region
      %s1339 = ssub.s32 256, 256
      %1340 = vsyncadd [#allocation4], %s1339
      %s1341 = sshll.u32 [#allocation7], 4
      %s1342 = int_to_ptr.vmem [resolvable:$true] %s1341
      %1347 = dma.vmem_to_hbm [thread:$0]  %s1342, 256, %s2, [#allocation4], 128, 128, 8
    $region21: #{tpu_custom_call.1} parent=1 // pred_fallthru
      _
    // Predicated region
    $region22: #{tpu_custom_call.1} parent=1 // pred_check
      _
    $region23: #{tpu_custom_call.1} parent=1 // pred_check_branch
      %1349 = sbr.rel (0) target = $region25
    $region24: #{tpu_custom_call.1} parent=1 // pred_region
      %1350 = dma.done [#allocation4], 256
    $region25: #{tpu_custom_call.1} parent=1 // pred_fallthru
      _
    %1351 = vsyncpa [#allocation3], 1
    %1352 = vsyncpa [#allocation6], 1
    %1353 = vsyncpa [#allocation4], 1

</llo_original>
